<compile_context>
chip_gen: v7x
topology: tpu7x:2x2x1
jax: 0.10.0
libtpu: 0.0.40
codegen_flags: <defaults>
</compile_context>

<pallas_src>
import jax
import jax.numpy as jnp
import numpy as np
from jax.experimental import pallas as pl
from jax.experimental.pallas import tpu as pltpu

_EPS = 1e-5
_NEG_SLOPE = 0.1
_LANES = 128
_VMEM_LIMIT = 32 * 1024 * 1024  # conservative; leaves headroom on v7x (64 MiB physical)


def _round_up(x, m):
    return (x + m - 1) // m * m


def _pick_row_tile(rows):
    """Largest row tile (multiple of 8, <= 1024) dividing `rows` with >= 2 grid
    steps; falls back to a single full-size tile (always a legal block)."""
    for cand in (1024, 512, 256, 128, 64, 32, 16, 8):
        if cand <= rows // 2 and rows % cand == 0:
            return cand
    return rows


def _conv_stats_kernel(p_ref, w_ref, y_ref, mean_ref, m2_ref):
    """One row tile of the 3x3 conv (single im2col matmul) plus a Chan-style
    running (mean, M2) combine for the global BatchNorm statistics.

    p_ref    : (TM, 9*Cin)   im2col patches for this row tile
    w_ref    : (9*Cin, Cpad) weights (Cout zero-padded to Cpad lanes)
    y_ref    : (TM, Cpad)    conv output tile (f32)
    mean_ref : (1, Cpad)     resident accumulator -> final per-channel mean
    m2_ref   : (1, Cpad)     resident accumulator -> final biased variance
    """
    i = pl.program_id(0)
    tm = p_ref.shape[0]

    @pl.when(i == 0)
    def _():
        mean_ref[...] = jnp.zeros_like(mean_ref)
        m2_ref[...] = jnp.zeros_like(m2_ref)

    # Single MXU matmul per tile (K = 9*Cin), f32 accumulation, lane-dense out.
    acc = jnp.dot(p_ref[...], w_ref[...], preferred_element_type=jnp.float32)
    y_ref[...] = acc

    # Per-tile statistics on dense (TM, Cpad) vregs.
    mu_t = jnp.mean(acc, axis=0, keepdims=True)
    m2_t = jnp.sum((acc - mu_t) * (acc - mu_t), axis=0, keepdims=True)

    # Chan's parallel-variance combine with the running accumulator.
    n_a = (i * tm).astype(jnp.float32)
    n_t = float(tm)
    n = n_a + n_t
    delta = mu_t - mean_ref[...]
    mean_ref[...] = mean_ref[...] + delta * (n_t / n)
    m2_ref[...] = m2_ref[...] + m2_t + delta * delta * (n_a * (n_t / n))

    @pl.when(i == pl.num_programs(0) - 1)
    def _():
        m2_ref[...] = m2_ref[...] / n  # biased variance (PyTorch BN training)


def _bn_lrelu_kernel(y_ref, mean_ref, var_ref, g_ref, b_ref, o_ref):
    """Normalize + affine + LeakyReLU(0.1) on one lane-dense row tile."""
    x = y_ref[...]
    scale = g_ref[...] * jax.lax.rsqrt(var_ref[...] + _EPS)
    h = (x - mean_ref[...]) * scale + b_ref[...]
    o_ref[...] = jnp.where(h >= 0.0, h, _NEG_SLOPE * h)


def _im2col(x_nhwc):
    """(N,H,W,C) -> (N*H*W, 9*C) patches for a 3x3 'same' conv (zero pad)."""
    N, H, W, C = x_nhwc.shape
    xp = jnp.pad(x_nhwc, ((0, 0), (1, 1), (1, 1), (0, 0)))
    taps = [xp[:, dy:dy + H, dx:dx + W, :] for dy in range(3) for dx in range(3)]
    return jnp.concatenate(taps, axis=-1).reshape(N * H * W, 9 * C)


def _conv_bn_lrelu(x_nhwc, w_hwio, gamma, beta):
    """One (Conv3x3 -> BatchNorm(train) -> LeakyReLU) stage, tiled over rows."""
    N, H, W, Cin = x_nhwc.shape
    Cout = w_hwio.shape[-1]
    Cpad = _round_up(Cout, _LANES)
    K = 9 * Cin
    R = N * H * W
    TM = _pick_row_tile(R)
    grid = (R // TM,)

    patches = _im2col(x_nhwc.astype(jnp.float32))                       # (R, K)
    w2d = jnp.pad(w_hwio.reshape(K, Cout).astype(jnp.float32),
                  ((0, 0), (0, Cpad - Cout)))                           # (K, Cpad)
    g = jnp.pad(gamma.astype(jnp.float32).reshape(1, Cout),
                ((0, 0), (0, Cpad - Cout)), constant_values=1.0)
    b = jnp.pad(beta.astype(jnp.float32).reshape(1, Cout),
                ((0, 0), (0, Cpad - Cout)))

    row_spec = pl.BlockSpec((TM, Cpad), lambda i: (i, 0))
    vec_spec = pl.BlockSpec((1, Cpad), lambda i: (0, 0))

    # Pass 1: conv matmul per tile + global BN stats (reduction -> 'arbitrary';
    # mean/M2 live in resident accumulator outputs).
    y_conv, mean, var = pl.pallas_call(
        _conv_stats_kernel,
        grid=grid,
        in_specs=(pl.BlockSpec((TM, K), lambda i: (i, 0)),
                  pl.BlockSpec((K, Cpad), lambda i: (0, 0))),
        out_specs=(row_spec, vec_spec, vec_spec),
        out_shape=(jax.ShapeDtypeStruct((R, Cpad), jnp.float32),
                   jax.ShapeDtypeStruct((1, Cpad), jnp.float32),
                   jax.ShapeDtypeStruct((1, Cpad), jnp.float32)),
        compiler_params=pltpu.CompilerParams(
            dimension_semantics=("arbitrary",),
            vmem_limit_bytes=_VMEM_LIMIT),
    )(patches, w2d)

    # Pass 2: normalize + affine + LeakyReLU; tiles are independent.
    # TODO(synk): on v7x, accumulate per-core partial BN stats so pass 1 can
    # also run 'parallel' across the two TensorCores.
    out = pl.pallas_call(
        _bn_lrelu_kernel,
        grid=grid,
        in_specs=(row_spec, vec_spec, vec_spec, vec_spec, vec_spec),
        out_specs=row_spec,
        out_shape=jax.ShapeDtypeStruct((R, Cpad), jnp.float32),
        compiler_params=pltpu.CompilerParams(
            dimension_semantics=("parallel",),
            vmem_limit_bytes=_VMEM_LIMIT),
    )(y_conv, mean, var, g, b)

    return out.reshape(N, H, W, Cpad)[..., :Cout]


@jax.jit
def double_conv(x_nchw, w1, g1, b1, w2, g2, b2):
    """DoubleConv forward. Input/output NCHW to match PyTorch."""
    x_nhwc = jnp.transpose(x_nchw, (0, 2, 3, 1))
    h = _conv_bn_lrelu(x_nhwc, w1, g1, b1)
    y = _conv_bn_lrelu(h, w2, g2, b2)
    return jnp.transpose(y, (0, 3, 1, 2))


def _reference(x_nchw, w1, g1, b1, w2, g2, b2):
    """Pure-JAX reference mirroring PyTorch training-mode DoubleConv."""
    def conv(x, w_hwio):
        return jax.lax.conv_general_dilated(
            x, w_hwio, window_strides=(1, 1), padding=((1, 1), (1, 1)),
            dimension_numbers=("NCHW", "HWIO", "NCHW"))

    def bn(x, g, b):
        mean = jnp.mean(x, axis=(0, 2, 3), keepdims=True)
        var = jnp.mean((x - mean) ** 2, axis=(0, 2, 3), keepdims=True)
        xn = (x - mean) * jax.lax.rsqrt(var + _EPS)
        return xn * g.reshape(1, -1, 1, 1) + b.reshape(1, -1, 1, 1)

    def lrelu(x):
        return jnp.where(x >= 0, x, _NEG_SLOPE * x)

    h = lrelu(bn(conv(x_nchw, w1), g1, b1))
    return lrelu(bn(conv(h, w2), g2, b2))


if __name__ == "__main__":
    key = jax.random.PRNGKey(0)
    k_x, k_w1, k_w2, k_g1, k_g2 = jax.random.split(key, 5)

    # Small shapes consistent with DoubleConv(in_channels=4, out_channels=8)
    N, Cin, H, W = 2, 4, 16, 16
    Cmid = Cout = 8

    x = jax.random.normal(k_x, (N, Cin, H, W), jnp.float32)

    # Deterministic synthetic parameters (HWIO weight layout for the kernel).
    w1 = 0.1 * jax.random.normal(k_w1, (3, 3, Cin, Cmid), jnp.float32)
    w2 = 0.1 * jax.random.normal(k_w2, (3, 3, Cmid, Cout), jnp.float32)
    g1 = 1.0 + 0.1 * jax.random.normal(k_g1, (Cmid,), jnp.float32)
    b1 = jnp.linspace(-0.2, 0.2, Cmid, dtype=jnp.float32)
    g2 = 1.0 + 0.1 * jax.random.normal(k_g2, (Cout,), jnp.float32)
    b2 = jnp.linspace(-0.1, 0.1, Cout, dtype=jnp.float32)

    y = double_conv(x, w1, g1, b1, w2, g2, b2)
    y = jax.block_until_ready(y)

    y_ref = _reference(x, w1, g1, b1, w2, g2, b2)
    np.testing.assert_allclose(np.asarray(y), np.asarray(y_ref),
                               rtol=2e-4, atol=2e-4)

    assert y.shape == (N, Cout, H, W) and y.dtype == jnp.float32
    print("KERNEL_OK")
</pallas_src>

<mosaic_0001>
module attributes {stable_mosaic.version = 11 : i64} {
  func.func @_bn_lrelu_kernel(%arg0: i32, %arg1: memref<256x128xf32, #tpu.memory_space<vmem>>, %arg2: memref<1x128xf32, #tpu.memory_space<vmem>>, %arg3: memref<1x128xf32, #tpu.memory_space<vmem>>, %arg4: memref<1x128xf32, #tpu.memory_space<vmem>>, %arg5: memref<1x128xf32, #tpu.memory_space<vmem>>, %arg6: memref<256x128xf32, #tpu.memory_space<vmem>>) attributes {dimension_semantics = [#tpu.dimension_semantics<parallel>], iteration_bounds = array<i64: 2>, scalar_prefetch = 0 : i64, scratch_operands = 0 : i64, tpu.core_type = #tpu.core_type<tc>, window_params = [{transform_indices = @transform_0, window_bounds = array<i64: 256, 128>}, {pipeline_mode = #tpu.pipeline_mode<synchronous>, transform_indices = @transform_1, window_bounds = array<i64: 1, 128>}, {pipeline_mode = #tpu.pipeline_mode<synchronous>, transform_indices = @transform_2, window_bounds = array<i64: 1, 128>}, {pipeline_mode = #tpu.pipeline_mode<synchronous>, transform_indices = @transform_3, window_bounds = array<i64: 1, 128>}, {pipeline_mode = #tpu.pipeline_mode<synchronous>, transform_indices = @transform_4, window_bounds = array<i64: 1, 128>}, {transform_indices = @transform_5, window_bounds = array<i64: 256, 128>}]} {
    %c0 = arith.constant 0 : index
    %c0_0 = arith.constant 0 : index
    %0 = vector.load %arg1[%c0, %c0_0] : memref<256x128xf32, #tpu.memory_space<vmem>>, vector<256x128xf32>
    %c0_1 = arith.constant 0 : index
    %c0_2 = arith.constant 0 : index
    %1 = vector.load %arg4[%c0_1, %c0_2] : memref<1x128xf32, #tpu.memory_space<vmem>>, vector<1x128xf32>
    %c0_3 = arith.constant 0 : index
    %c0_4 = arith.constant 0 : index
    %2 = vector.load %arg3[%c0_3, %c0_4] : memref<1x128xf32, #tpu.memory_space<vmem>>, vector<1x128xf32>
    %cst = arith.constant 9.99999974E-6 : f32
    %3 = vector.broadcast %cst : f32 to vector<1x128xf32>
    %4 = arith.addf %2, %3 : vector<1x128xf32>
    %5 = math.rsqrt %4 : vector<1x128xf32>
    %6 = arith.mulf %1, %5 : vector<1x128xf32>
    %c0_5 = arith.constant 0 : index
    %c0_6 = arith.constant 0 : index
    %7 = vector.load %arg2[%c0_5, %c0_6] : memref<1x128xf32, #tpu.memory_space<vmem>>, vector<1x128xf32>
    %8 = vector.broadcast %7 : vector<1x128xf32> to vector<256x128xf32>
    %9 = arith.subf %0, %8 : vector<256x128xf32>
    %10 = vector.broadcast %6 : vector<1x128xf32> to vector<256x128xf32>
    %11 = arith.mulf %9, %10 : vector<256x128xf32>
    %c0_7 = arith.constant 0 : index
    %c0_8 = arith.constant 0 : index
    %12 = vector.load %arg5[%c0_7, %c0_8] : memref<1x128xf32, #tpu.memory_space<vmem>>, vector<1x128xf32>
    %13 = vector.broadcast %12 : vector<1x128xf32> to vector<256x128xf32>
    %14 = arith.addf %11, %13 : vector<256x128xf32>
    %cst_9 = arith.constant 0.000000e+00 : f32
    %15 = vector.broadcast %cst_9 : f32 to vector<256x128xf32>
    %16 = arith.cmpf oge, %14, %15 : vector<256x128xf32>
    %cst_10 = arith.constant 1.000000e-01 : f32
    %17 = vector.broadcast %cst_10 : f32 to vector<256x128xf32>
    %18 = arith.mulf %17, %14 : vector<256x128xf32>
    %19 = arith.select %16, %14, %18 : vector<256x128xi1>, vector<256x128xf32>
    %c0_11 = arith.constant 0 : index
    %c0_12 = arith.constant 0 : index
    %20 = vector.load %arg6[%c0_11, %c0_12] : memref<256x128xf32, #tpu.memory_space<vmem>>, vector<256x128xf32>
    tpu.vector_store %arg6[%c0_11, %c0_12], %19 {strides = array<i32>} : memref<256x128xf32, #tpu.memory_space<vmem>>, vector<256x128xf32>,
    return
  }
  func.func @transform_0(%arg0: i32) -> (i32, i32) {
    %c0_i32 = arith.constant 0 : i32
    %c0_i32_0 = arith.constant 0 : i32
    return %arg0, %c0_i32 : i32, i32
  }
  func.func @transform_1(%arg0: i32) -> (i32, i32) {
    %c0_i32 = arith.constant 0 : i32
    %c0_i32_0 = arith.constant 0 : i32
    %c0_i32_1 = arith.constant 0 : i32
    return %c0_i32, %c0_i32_0 : i32, i32
  }
  func.func @transform_2(%arg0: i32) -> (i32, i32) {
    %c0_i32 = arith.constant 0 : i32
    %c0_i32_0 = arith.constant 0 : i32
    %c0_i32_1 = arith.constant 0 : i32
    return %c0_i32, %c0_i32_0 : i32, i32
  }
  func.func @transform_3(%arg0: i32) -> (i32, i32) {
    %c0_i32 = arith.constant 0 : i32
    %c0_i32_0 = arith.constant 0 : i32
    %c0_i32_1 = arith.constant 0 : i32
    return %c0_i32, %c0_i32_0 : i32, i32
  }
  func.func @transform_4(%arg0: i32) -> (i32, i32) {
    %c0_i32 = arith.constant 0 : i32
    %c0_i32_0 = arith.constant 0 : i32
    %c0_i32_1 = arith.constant 0 : i32
    return %c0_i32, %c0_i32_0 : i32, i32
  }
  func.func @transform_5(%arg0: i32) -> (i32, i32) {
    %c0_i32 = arith.constant 0 : i32
    %c0_i32_0 = arith.constant 0 : i32
    return %arg0, %c0_i32 : i32, i32
  }
}

module attributes {stable_mosaic.version = 11 : i64} {
  func.func @_conv_stats_kernel(%arg0: i32, %arg1: memref<256x36xf32, #tpu.memory_space<vmem>>, %arg2: memref<36x128xf32, #tpu.memory_space<vmem>>, %arg3: memref<256x128xf32, #tpu.memory_space<vmem>>, %arg4: memref<1x128xf32, #tpu.memory_space<vmem>>, %arg5: memref<1x128xf32, #tpu.memory_space<vmem>>) attributes {dimension_semantics = [#tpu.dimension_semantics<arbitrary>], iteration_bounds = array<i64: 2>, scalar_prefetch = 0 : i64, scratch_operands = 0 : i64, tpu.core_type = #tpu.core_type<tc>, window_params = [{transform_indices = @transform_0, window_bounds = array<i64: 256, 36>}, {pipeline_mode = #tpu.pipeline_mode<synchronous>, transform_indices = @transform_1, window_bounds = array<i64: 36, 128>}, {transform_indices = @transform_2, window_bounds = array<i64: 256, 128>}, {pipeline_mode = #tpu.pipeline_mode<synchronous>, transform_indices = @transform_3, window_bounds = array<i64: 1, 128>}, {pipeline_mode = #tpu.pipeline_mode<synchronous>, transform_indices = @transform_4, window_bounds = array<i64: 1, 128>}]} {
    %c0_i32 = arith.constant 0 : i32
    %0 = arith.cmpi eq, %arg0, %c0_i32 : i32
    %1 = arith.extui %0 : i1 to i32
    %c0_i32_0 = arith.constant 0 : i32
    %2 = arith.cmpi ne, %1, %c0_i32_0 : i32
    scf.if %2 {
      %cst_23 = arith.constant 0.000000e+00 : f32
      %41 = vector.broadcast %cst_23 : f32 to vector<1x128xf32>
      %c0_24 = arith.constant 0 : index
      %c0_25 = arith.constant 0 : index
      %42 = vector.load %arg4[%c0_24, %c0_25] : memref<1x128xf32, #tpu.memory_space<vmem>>, vector<1x128xf32>
      tpu.vector_store %arg4[%c0_24, %c0_25], %41 {strides = array<i32>} : memref<1x128xf32, #tpu.memory_space<vmem>>, vector<1x128xf32>,
      %cst_26 = arith.constant 0.000000e+00 : f32
      %43 = vector.broadcast %cst_26 : f32 to vector<1x128xf32>
      %c0_27 = arith.constant 0 : index
      %c0_28 = arith.constant 0 : index
      %44 = vector.load %arg5[%c0_27, %c0_28] : memref<1x128xf32, #tpu.memory_space<vmem>>, vector<1x128xf32>
      tpu.vector_store %arg5[%c0_27, %c0_28], %43 {strides = array<i32>} : memref<1x128xf32, #tpu.memory_space<vmem>>, vector<1x128xf32>,
    } else {
    }
    %c0 = arith.constant 0 : index
    %c0_1 = arith.constant 0 : index
    %3 = vector.load %arg1[%c0, %c0_1] : memref<256x36xf32, #tpu.memory_space<vmem>>, vector<256x36xf32>
    %c0_2 = arith.constant 0 : index
    %c0_3 = arith.constant 0 : index
    %4 = vector.load %arg2[%c0_2, %c0_3] : memref<36x128xf32, #tpu.memory_space<vmem>>, vector<36x128xf32>
    %cst = arith.constant dense<0.000000e+00> : vector<256x128xf32>
    %5 = tpu.matmul %3, %4, %cst {dimension_numbers = #tpu.dot_dimension_numbers<[1], [0], [0], [1], [0, 0, 1, 1], [], []>} : vector<256x36xf32>, vector<36x128xf32>, vector<256x128xf32> -> vector<256x128xf32>
    %c0_4 = arith.constant 0 : index
    %c0_5 = arith.constant 0 : index
    %6 = vector.load %arg3[%c0_4, %c0_5] : memref<256x128xf32, #tpu.memory_space<vmem>>, vector<256x128xf32>
    tpu.vector_store %arg3[%c0_4, %c0_5], %5 {strides = array<i32>} : memref<256x128xf32, #tpu.memory_space<vmem>>, vector<256x128xf32>,
    %cst_6 = arith.constant dense<0.000000e+00> : vector<128xf32>
    %7 = vector.multi_reduction <add>, %5, %cst_6 [0] : vector<256x128xf32> to vector<128xf32>
    %8 = vector.shape_cast %7 : vector<128xf32> to vector<1x128xf32>
    %cst_7 = arith.constant 2.560000e+02 : f32
    %9 = vector.broadcast %cst_7 : f32 to vector<1x128xf32>
    %10 = arith.divf %8, %9 : vector<1x128xf32>
    %11 = vector.broadcast %10 : vector<1x128xf32> to vector<256x128xf32>
    %12 = arith.subf %5, %11 : vector<256x128xf32>
    %13 = vector.broadcast %10 : vector<1x128xf32> to vector<256x128xf32>
    %14 = arith.subf %5, %13 : vector<256x128xf32>
    %15 = arith.mulf %12, %14 : vector<256x128xf32>
    %cst_8 = arith.constant dense<0.000000e+00> : vector<128xf32>
    %16 = vector.multi_reduction <add>, %15, %cst_8 [0] : vector<256x128xf32> to vector<128xf32>
    %17 = vector.shape_cast %16 : vector<128xf32> to vector<1x128xf32>
    %c256_i32 = arith.constant 256 : i32
    %18 = arith.muli %arg0, %c256_i32 : i32
    %19 = arith.sitofp %18 : i32 to f32
    %cst_9 = arith.constant 2.560000e+02 : f32
    %20 = arith.addf %19, %cst_9 : f32
    %c0_10 = arith.constant 0 : index
    %c0_11 = arith.constant 0 : index
    %21 = vector.load %arg4[%c0_10, %c0_11] : memref<1x128xf32, #tpu.memory_space<vmem>>, vector<1x128xf32>
    %22 = arith.subf %10, %21 : vector<1x128xf32>
    %c0_12 = arith.constant 0 : index
    %c0_13 = arith.constant 0 : index
    %23 = vector.load %arg4[%c0_12, %c0_13] : memref<1x128xf32, #tpu.memory_space<vmem>>, vector<1x128xf32>
    %cst_14 = arith.constant 2.560000e+02 : f32
    %24 = arith.divf %cst_14, %20 : f32
    %25 = vector.broadcast %24 : f32 to vector<1x128xf32>
    %26 = arith.mulf %22, %25 : vector<1x128xf32>
    %27 = arith.addf %23, %26 : vector<1x128xf32>
    %c0_15 = arith.constant 0 : index
    %c0_16 = arith.constant 0 : index
    %28 = vector.load %arg4[%c0_15, %c0_16] : memref<1x128xf32, #tpu.memory_space<vmem>>, vector<1x128xf32>
    tpu.vector_store %arg4[%c0_15, %c0_16], %27 {strides = array<i32>} : memref<1x128xf32, #tpu.memory_space<vmem>>, vector<1x128xf32>,
    %c0_17 = arith.constant 0 : index
    %c0_18 = arith.constant 0 : index
    %29 = vector.load %arg5[%c0_17, %c0_18] : memref<1x128xf32, #tpu.memory_space<vmem>>, vector<1x128xf32>
    %30 = arith.addf %29, %17 : vector<1x128xf32>
    %31 = arith.mulf %22, %22 : vector<1x128xf32>
    %cst_19 = arith.constant 2.560000e+02 : f32
    %32 = arith.divf %cst_19, %20 : f32
    %33 = arith.mulf %19, %32 : f32
    %34 = vector.broadcast %33 : f32 to vector<1x128xf32>
    %35 = arith.mulf %31, %34 : vector<1x128xf32>
    %36 = arith.addf %30, %35 : vector<1x128xf32>
    %c0_20 = arith.constant 0 : index
    %c0_21 = arith.constant 0 : index
    %37 = vector.load %arg5[%c0_20, %c0_21] : memref<1x128xf32, #tpu.memory_space<vmem>>, vector<1x128xf32>
    tpu.vector_store %arg5[%c0_20, %c0_21], %36 {strides = array<i32>} : memref<1x128xf32, #tpu.memory_space<vmem>>, vector<1x128xf32>,
    %c1_i32 = arith.constant 1 : i32
    %38 = arith.cmpi eq, %arg0, %c1_i32 : i32
    %39 = arith.extui %38 : i1 to i32
    %c0_i32_22 = arith.constant 0 : i32
    %40 = arith.cmpi ne, %39, %c0_i32_22 : i32
    scf.if %40 {
      %c0_23 = arith.constant 0 : index
      %c0_24 = arith.constant 0 : index
      %41 = vector.load %arg5[%c0_23, %c0_24] : memref<1x128xf32, #tpu.memory_space<vmem>>, vector<1x128xf32>
      %42 = vector.broadcast %20 : f32 to vector<1x128xf32>
      %43 = arith.divf %41, %42 : vector<1x128xf32>
      %c0_25 = arith.constant 0 : index
      %c0_26 = arith.constant 0 : index
      %44 = vector.load %arg5[%c0_25, %c0_26] : memref<1x128xf32, #tpu.memory_space<vmem>>, vector<1x128xf32>
      tpu.vector_store %arg5[%c0_25, %c0_26], %43 {strides = array<i32>} : memref<1x128xf32, #tpu.memory_space<vmem>>, vector<1x128xf32>,
    } else {
    }
    return
  }
  func.func @transform_0(%arg0: i32) -> (i32, i32) {
    %c0_i32 = arith.constant 0 : i32
    %c0_i32_0 = arith.constant 0 : i32
    return %arg0, %c0_i32 : i32, i32
  }
  func.func @transform_1(%arg0: i32) -> (i32, i32) {
    %c0_i32 = arith.constant 0 : i32
    %c0_i32_0 = arith.constant 0 : i32
    %c0_i32_1 = arith.constant 0 : i32
    return %c0_i32, %c0_i32_0 : i32, i32
  }
  func.func @transform_2(%arg0: i32) -> (i32, i32) {
    %c0_i32 = arith.constant 0 : i32
    %c0_i32_0 = arith.constant 0 : i32
    return %arg0, %c0_i32 : i32, i32
  }
  func.func @transform_3(%arg0: i32) -> (i32, i32) {
    %c0_i32 = arith.constant 0 : i32
    %c0_i32_0 = arith.constant 0 : i32
    %c0_i32_1 = arith.constant 0 : i32
    return %c0_i32, %c0_i32_0 : i32, i32
  }
  func.func @transform_4(%arg0: i32) -> (i32, i32) {
    %c0_i32 = arith.constant 0 : i32
    %c0_i32_0 = arith.constant 0 : i32
    %c0_i32_1 = arith.constant 0 : i32
    return %c0_i32, %c0_i32_0 : i32, i32
  }
}

module attributes {stable_mosaic.version = 11 : i64} {
  func.func @_conv_stats_kernel(%arg0: i32, %arg1: memref<256x72xf32, #tpu.memory_space<vmem>>, %arg2: memref<72x128xf32, #tpu.memory_space<vmem>>, %arg3: memref<256x128xf32, #tpu.memory_space<vmem>>, %arg4: memref<1x128xf32, #tpu.memory_space<vmem>>, %arg5: memref<1x128xf32, #tpu.memory_space<vmem>>) attributes {dimension_semantics = [#tpu.dimension_semantics<arbitrary>], iteration_bounds = array<i64: 2>, scalar_prefetch = 0 : i64, scratch_operands = 0 : i64, tpu.core_type = #tpu.core_type<tc>, window_params = [{transform_indices = @transform_0, window_bounds = array<i64: 256, 72>}, {pipeline_mode = #tpu.pipeline_mode<synchronous>, transform_indices = @transform_1, window_bounds = array<i64: 72, 128>}, {transform_indices = @transform_2, window_bounds = array<i64: 256, 128>}, {pipeline_mode = #tpu.pipeline_mode<synchronous>, transform_indices = @transform_3, window_bounds = array<i64: 1, 128>}, {pipeline_mode = #tpu.pipeline_mode<synchronous>, transform_indices = @transform_4, window_bounds = array<i64: 1, 128>}]} {
    %c0_i32 = arith.constant 0 : i32
    %0 = arith.cmpi eq, %arg0, %c0_i32 : i32
    %1 = arith.extui %0 : i1 to i32
    %c0_i32_0 = arith.constant 0 : i32
    %2 = arith.cmpi ne, %1, %c0_i32_0 : i32
    scf.if %2 {
      %cst_23 = arith.constant 0.000000e+00 : f32
      %41 = vector.broadcast %cst_23 : f32 to vector<1x128xf32>
      %c0_24 = arith.constant 0 : index
      %c0_25 = arith.constant 0 : index
      %42 = vector.load %arg4[%c0_24, %c0_25] : memref<1x128xf32, #tpu.memory_space<vmem>>, vector<1x128xf32>
      tpu.vector_store %arg4[%c0_24, %c0_25], %41 {strides = array<i32>} : memref<1x128xf32, #tpu.memory_space<vmem>>, vector<1x128xf32>,
      %cst_26 = arith.constant 0.000000e+00 : f32
      %43 = vector.broadcast %cst_26 : f32 to vector<1x128xf32>
      %c0_27 = arith.constant 0 : index
      %c0_28 = arith.constant 0 : index
      %44 = vector.load %arg5[%c0_27, %c0_28] : memref<1x128xf32, #tpu.memory_space<vmem>>, vector<1x128xf32>
      tpu.vector_store %arg5[%c0_27, %c0_28], %43 {strides = array<i32>} : memref<1x128xf32, #tpu.memory_space<vmem>>, vector<1x128xf32>,
    } else {
    }
    %c0 = arith.constant 0 : index
    %c0_1 = arith.constant 0 : index
    %3 = vector.load %arg1[%c0, %c0_1] : memref<256x72xf32, #tpu.memory_space<vmem>>, vector<256x72xf32>
    %c0_2 = arith.constant 0 : index
    %c0_3 = arith.constant 0 : index
    %4 = vector.load %arg2[%c0_2, %c0_3] : memref<72x128xf32, #tpu.memory_space<vmem>>, vector<72x128xf32>
    %cst = arith.constant dense<0.000000e+00> : vector<256x128xf32>
    %5 = tpu.matmul %3, %4, %cst {dimension_numbers = #tpu.dot_dimension_numbers<[1], [0], [0], [1], [0, 0, 1, 1], [], []>} : vector<256x72xf32>, vector<72x128xf32>, vector<256x128xf32> -> vector<256x128xf32>
    %c0_4 = arith.constant 0 : index
    %c0_5 = arith.constant 0 : index
    %6 = vector.load %arg3[%c0_4, %c0_5] : memref<256x128xf32, #tpu.memory_space<vmem>>, vector<256x128xf32>
    tpu.vector_store %arg3[%c0_4, %c0_5], %5 {strides = array<i32>} : memref<256x128xf32, #tpu.memory_space<vmem>>, vector<256x128xf32>,
    %cst_6 = arith.constant dense<0.000000e+00> : vector<128xf32>
    %7 = vector.multi_reduction <add>, %5, %cst_6 [0] : vector<256x128xf32> to vector<128xf32>
    %8 = vector.shape_cast %7 : vector<128xf32> to vector<1x128xf32>
    %cst_7 = arith.constant 2.560000e+02 : f32
    %9 = vector.broadcast %cst_7 : f32 to vector<1x128xf32>
    %10 = arith.divf %8, %9 : vector<1x128xf32>
    %11 = vector.broadcast %10 : vector<1x128xf32> to vector<256x128xf32>
    %12 = arith.subf %5, %11 : vector<256x128xf32>
    %13 = vector.broadcast %10 : vector<1x128xf32> to vector<256x128xf32>
    %14 = arith.subf %5, %13 : vector<256x128xf32>
    %15 = arith.mulf %12, %14 : vector<256x128xf32>
    %cst_8 = arith.constant dense<0.000000e+00> : vector<128xf32>
    %16 = vector.multi_reduction <add>, %15, %cst_8 [0] : vector<256x128xf32> to vector<128xf32>
    %17 = vector.shape_cast %16 : vector<128xf32> to vector<1x128xf32>
    %c256_i32 = arith.constant 256 : i32
    %18 = arith.muli %arg0, %c256_i32 : i32
    %19 = arith.sitofp %18 : i32 to f32
    %cst_9 = arith.constant 2.560000e+02 : f32
    %20 = arith.addf %19, %cst_9 : f32
    %c0_10 = arith.constant 0 : index
    %c0_11 = arith.constant 0 : index
    %21 = vector.load %arg4[%c0_10, %c0_11] : memref<1x128xf32, #tpu.memory_space<vmem>>, vector<1x128xf32>
    %22 = arith.subf %10, %21 : vector<1x128xf32>
    %c0_12 = arith.constant 0 : index
    %c0_13 = arith.constant 0 : index
    %23 = vector.load %arg4[%c0_12, %c0_13] : memref<1x128xf32, #tpu.memory_space<vmem>>, vector<1x128xf32>
    %cst_14 = arith.constant 2.560000e+02 : f32
    %24 = arith.divf %cst_14, %20 : f32
    %25 = vector.broadcast %24 : f32 to vector<1x128xf32>
    %26 = arith.mulf %22, %25 : vector<1x128xf32>
    %27 = arith.addf %23, %26 : vector<1x128xf32>
    %c0_15 = arith.constant 0 : index
    %c0_16 = arith.constant 0 : index
    %28 = vector.load %arg4[%c0_15, %c0_16] : memref<1x128xf32, #tpu.memory_space<vmem>>, vector<1x128xf32>
    tpu.vector_store %arg4[%c0_15, %c0_16], %27 {strides = array<i32>} : memref<1x128xf32, #tpu.memory_space<vmem>>, vector<1x128xf32>,
    %c0_17 = arith.constant 0 : index
    %c0_18 = arith.constant 0 : index
    %29 = vector.load %arg5[%c0_17, %c0_18] : memref<1x128xf32, #tpu.memory_space<vmem>>, vector<1x128xf32>
    %30 = arith.addf %29, %17 : vector<1x128xf32>
    %31 = arith.mulf %22, %22 : vector<1x128xf32>
    %cst_19 = arith.constant 2.560000e+02 : f32
    %32 = arith.divf %cst_19, %20 : f32
    %33 = arith.mulf %19, %32 : f32
    %34 = vector.broadcast %33 : f32 to vector<1x128xf32>
    %35 = arith.mulf %31, %34 : vector<1x128xf32>
    %36 = arith.addf %30, %35 : vector<1x128xf32>
    %c0_20 = arith.constant 0 : index
    %c0_21 = arith.constant 0 : index
    %37 = vector.load %arg5[%c0_20, %c0_21] : memref<1x128xf32, #tpu.memory_space<vmem>>, vector<1x128xf32>
    tpu.vector_store %arg5[%c0_20, %c0_21], %36 {strides = array<i32>} : memref<1x128xf32, #tpu.memory_space<vmem>>, vector<1x128xf32>,
    %c1_i32 = arith.constant 1 : i32
    %38 = arith.cmpi eq, %arg0, %c1_i32 : i32
    %39 = arith.extui %38 : i1 to i32
    %c0_i32_22 = arith.constant 0 : i32
    %40 = arith.cmpi ne, %39, %c0_i32_22 : i32
    scf.if %40 {
      %c0_23 = arith.constant 0 : index
      %c0_24 = arith.constant 0 : index
      %41 = vector.load %arg5[%c0_23, %c0_24] : memref<1x128xf32, #tpu.memory_space<vmem>>, vector<1x128xf32>
      %42 = vector.broadcast %20 : f32 to vector<1x128xf32>
      %43 = arith.divf %41, %42 : vector<1x128xf32>
      %c0_25 = arith.constant 0 : index
      %c0_26 = arith.constant 0 : index
      %44 = vector.load %arg5[%c0_25, %c0_26] : memref<1x128xf32, #tpu.memory_space<vmem>>, vector<1x128xf32>
      tpu.vector_store %arg5[%c0_25, %c0_26], %43 {strides = array<i32>} : memref<1x128xf32, #tpu.memory_space<vmem>>, vector<1x128xf32>,
    } else {
    }
    return
  }
  func.func @transform_0(%arg0: i32) -> (i32, i32) {
    %c0_i32 = arith.constant 0 : i32
    %c0_i32_0 = arith.constant 0 : i32
    return %arg0, %c0_i32 : i32, i32
  }
  func.func @transform_1(%arg0: i32) -> (i32, i32) {
    %c0_i32 = arith.constant 0 : i32
    %c0_i32_0 = arith.constant 0 : i32
    %c0_i32_1 = arith.constant 0 : i32
    return %c0_i32, %c0_i32_0 : i32, i32
  }
  func.func @transform_2(%arg0: i32) -> (i32, i32) {
    %c0_i32 = arith.constant 0 : i32
    %c0_i32_0 = arith.constant 0 : i32
    return %arg0, %c0_i32 : i32, i32
  }
  func.func @transform_3(%arg0: i32) -> (i32, i32) {
    %c0_i32 = arith.constant 0 : i32
    %c0_i32_0 = arith.constant 0 : i32
    %c0_i32_1 = arith.constant 0 : i32
    return %c0_i32, %c0_i32_0 : i32, i32
  }
  func.func @transform_4(%arg0: i32) -> (i32, i32) {
    %c0_i32 = arith.constant 0 : i32
    %c0_i32_0 = arith.constant 0 : i32
    %c0_i32_1 = arith.constant 0 : i32
    return %c0_i32, %c0_i32_0 : i32, i32
  }
}

</mosaic_0001>

<llo_original>
// kernel: double_conv.5
$region0: #{double_conv.5}
  #allocation0 [shape = 'u32[]', space=smem, size = 0x4, offset = 0x4, fixed_abs, tag = 'smem constant byte address 0x4 - core index']
  #allocation1 [shape = 'u32[144,128]{1,0:T(1,128)}', space=vmem, size = 0x12000, scoped, tag = 'internal scratch']
  %s0 = inlined_call_operand.vmem [shape: f32[512,128], index: 0, kind: input, shape index: {}]
  %s1 = inlined_call_operand.vmem [shape: f32[1,128], index: 1, kind: input, shape index: {}]
  %s2 = inlined_call_operand.vmem [shape: f32[1,128], index: 2, kind: input, shape index: {}]
  %s3 = inlined_call_operand.vmem [shape: f32[1,128], index: 3, kind: input, shape index: {}]
  %s4 = inlined_call_operand.vmem [shape: f32[1,128], index: 4, kind: input, shape index: {}]
  %s5 = inlined_call_operand.vmem [shape: f32[512,128], index: 5, kind: output, shape index: {}]
  %s6 = sld [smem:[#allocation0]]
  $region53: #{double_conv.5} parent=0
    _
  %s8 = ssub.s32 1, %s6
  %s9 = scalar_select 0, %s8, %s6
  loop: start=0, step=1, limit=4
  $region2: #{double_conv.5} parent=0 // loop_pre_header
    _
  $region3: #{double_conv.5} parent=0 // loop_header
    %s11 = sphi 0, %s15
    %p12 = scmp.ge.s32.totalorder %s11, 4
    %s21 = sphi 0, %s23
    %s24 = sphi 0, %s21
    %s25 = sphi 0, %s24
    %s41 = sphi 0, %s25
    %s45 = sphi 0, %s45
    %s47 = sphi 0, %s45
    %s48 = sphi 0, %s47
    %s62 = sphi 0, %s48
    %s66 = sphi 0, %s66
    %s68 = sphi 0, %s66
    %s69 = sphi 0, %s68
    %s83 = sphi 0, %s69
    %s87 = sphi 0, %s87
    %s89 = sphi 0, %s87
    %s90 = sphi 0, %s89
    %s104 = sphi 0, %s90
    %s108 = sphi 0, %s108
    %s110 = sphi 0, %s108
    %s111 = sphi 0, %s110
    %s125 = sphi 0, %s111
    %s131 = sphi 0, %s133
    %s134 = sphi 0, %s131
    %s135 = sphi 0, %s134
    %s151 = sphi 0, %s135
  $region4: #{double_conv.5} parent=0 // loop_header_branch
    %14 = sbr.rel (%p12) target = $region8
  $region5: #{double_conv.5} parent=0 // loop_body
    %s16 = ssub.s32 %s11, 1
    %s17 = ssub.s32 %s11, 2
    %s18 = sadd.s32 %s11, 1
    %s19 = ssub.s32 %s11, %s18
    %p20 = scmp.eq.s32.totalorder %s19, 0
    %s22 = sadd.s32 %s21, 1
    %s23 = scalar_select %p20, %s21, %s22
    %p26 = pneg %p20
    %p27 = scmp.eq.s32.totalorder %s11, 1
    %p28 = por %p26, %p27
    %p29 = scmp.ne.s32.totalorder %s21, %s24
    %p30 = scmp.eq.s32.totalorder %s11, 0
    %p31 = por %p29, %p30
    %p32 = scmp.ne.s32.totalorder %s21, %s24
    %p33 = scmp.eq.s32.totalorder %s16, 1
    %p34 = por %p32, %p33
    %p35 = scmp.ne.s32.totalorder %s24, %s25
    %p36 = scmp.eq.s32.totalorder %s16, 0
    %p37 = por %p35, %p36
    %p38 = scmp.ne.s32.totalorder %s24, %s25
    %p39 = scmp.eq.s32.totalorder %s17, 1
    %p40 = por %p38, %p39
    %p42 = scmp.ne.s32.totalorder %s25, %s41
    %p43 = scmp.eq.s32.totalorder %s17, 0
    %p44 = por %p42, %p43
    %s46 = sadd.s32 %s45, 1
    %p49 = scmp.eq.s32.totalorder %s11, 1
    %p50 = scmp.ne.s32.totalorder %s45, %s47
    %p51 = scmp.eq.s32.totalorder %s11, 0
    %p52 = por %p50, %p51
    %p53 = scmp.ne.s32.totalorder %s45, %s47
    %p54 = scmp.eq.s32.totalorder %s16, 1
    %p55 = por %p53, %p54
    %p56 = scmp.ne.s32.totalorder %s47, %s48
    %p57 = scmp.eq.s32.totalorder %s16, 0
    %p58 = por %p56, %p57
    %p59 = scmp.ne.s32.totalorder %s47, %s48
    %p60 = scmp.eq.s32.totalorder %s17, 1
    %p61 = por %p59, %p60
    %p63 = scmp.ne.s32.totalorder %s48, %s62
    %p64 = scmp.eq.s32.totalorder %s17, 0
    %p65 = por %p63, %p64
    %s67 = sadd.s32 %s66, 1
    %p70 = scmp.eq.s32.totalorder %s11, 1
    %p71 = scmp.ne.s32.totalorder %s66, %s68
    %p72 = scmp.eq.s32.totalorder %s11, 0
    %p73 = por %p71, %p72
    %p74 = scmp.ne.s32.totalorder %s66, %s68
    %p75 = scmp.eq.s32.totalorder %s16, 1
    %p76 = por %p74, %p75
    %p77 = scmp.ne.s32.totalorder %s68, %s69
    %p78 = scmp.eq.s32.totalorder %s16, 0
    %p79 = por %p77, %p78
    %p80 = scmp.ne.s32.totalorder %s68, %s69
    %p81 = scmp.eq.s32.totalorder %s17, 1
    %p82 = por %p80, %p81
    %p84 = scmp.ne.s32.totalorder %s69, %s83
    %p85 = scmp.eq.s32.totalorder %s17, 0
    %p86 = por %p84, %p85
    %s88 = sadd.s32 %s87, 1
    %p91 = scmp.eq.s32.totalorder %s11, 1
    %p92 = scmp.ne.s32.totalorder %s87, %s89
    %p93 = scmp.eq.s32.totalorder %s11, 0
    %p94 = por %p92, %p93
    %p95 = scmp.ne.s32.totalorder %s87, %s89
    %p96 = scmp.eq.s32.totalorder %s16, 1
    %p97 = por %p95, %p96
    %p98 = scmp.ne.s32.totalorder %s89, %s90
    %p99 = scmp.eq.s32.totalorder %s16, 0
    %p100 = por %p98, %p99
    %p101 = scmp.ne.s32.totalorder %s89, %s90
    %p102 = scmp.eq.s32.totalorder %s17, 1
    %p103 = por %p101, %p102
    %p105 = scmp.ne.s32.totalorder %s90, %s104
    %p106 = scmp.eq.s32.totalorder %s17, 0
    %p107 = por %p105, %p106
    %s109 = sadd.s32 %s108, 1
    %p112 = scmp.eq.s32.totalorder %s11, 1
    %p113 = scmp.ne.s32.totalorder %s108, %s110
    %p114 = scmp.eq.s32.totalorder %s11, 0
    %p115 = por %p113, %p114
    %p116 = scmp.ne.s32.totalorder %s108, %s110
    %p117 = scmp.eq.s32.totalorder %s16, 1
    %p118 = por %p116, %p117
    %p119 = scmp.ne.s32.totalorder %s110, %s111
    %p120 = scmp.eq.s32.totalorder %s16, 0
    %p121 = por %p119, %p120
    %p122 = scmp.ne.s32.totalorder %s110, %s111
    %p123 = scmp.eq.s32.totalorder %s17, 1
    %p124 = por %p122, %p123
    %p126 = scmp.ne.s32.totalorder %s111, %s125
    %p127 = scmp.eq.s32.totalorder %s17, 0
    %p128 = por %p126, %p127
    %s129 = ssub.s32 %s11, %s18
    %p130 = scmp.eq.s32.totalorder %s129, 0
    %s132 = sadd.s32 %s131, 1
    %s133 = scalar_select %p130, %s131, %s132
    %p136 = pneg %p130
    %p137 = scmp.eq.s32.totalorder %s11, 1
    %p138 = por %p136, %p137
    %p139 = scmp.ne.s32.totalorder %s131, %s134
    %p140 = scmp.eq.s32.totalorder %s11, 0
    %p141 = por %p139, %p140
    %p142 = scmp.ne.s32.totalorder %s131, %s134
    %p143 = scmp.eq.s32.totalorder %s16, 1
    %p144 = por %p142, %p143
    %p145 = scmp.ne.s32.totalorder %s134, %s135
    %p146 = scmp.eq.s32.totalorder %s16, 0
    %p147 = por %p145, %p146
    %p148 = scmp.ne.s32.totalorder %s134, %s135
    %p149 = scmp.eq.s32.totalorder %s17, 1
    %p150 = por %p148, %p149
    %p152 = scmp.ne.s32.totalorder %s135, %s151
    %p153 = scmp.eq.s32.totalorder %s17, 0
    %p154 = por %p152, %p153
    %p155 = scmp.le.s32.totalorder 1, %s11
    %p156 = scmp.lt.s32.totalorder %s11, 3
    %p157 = pnand %p155, %p156
    %p158 = pneg %p157
    // Predicated region
    $region9: #{double_conv.5} parent=5 // pred_check
      _
    $region10: #{double_conv.5} parent=5 // pred_check_branch
      %160 = sbr.rel (%p157) target = $region12
    $region11: #{double_conv.5} parent=5 // pred_region
      %s161 = ssub.s32 %s11, 1
      // Predicated region
      $region13: #{double_conv.5} parent=11 // pred_check
        %p162 = pneg %p58
      $region14: #{double_conv.5} parent=11 // pred_check_branch
        %164 = sbr.rel (%p162) target = $region16
      $region15: #{double_conv.5} parent=11 // pred_region
        _
      $region16: #{double_conv.5} parent=11 // pred_fallthru
        _
      // Predicated region
      $region17: #{double_conv.5} parent=11 // pred_check
        %p165 = pneg %p79
      $region18: #{double_conv.5} parent=11 // pred_check_branch
        %167 = sbr.rel (%p165) target = $region20
      $region19: #{double_conv.5} parent=11 // pred_region
        _
      $region20: #{double_conv.5} parent=11 // pred_fallthru
        _
      // Predicated region
      $region21: #{double_conv.5} parent=11 // pred_check
        %p168 = pneg %p100
      $region22: #{double_conv.5} parent=11 // pred_check_branch
        %170 = sbr.rel (%p168) target = $region24
      $region23: #{double_conv.5} parent=11 // pred_region
        _
      $region24: #{double_conv.5} parent=11 // pred_fallthru
        _
      // Predicated region
      $region25: #{double_conv.5} parent=11 // pred_check
        %p171 = pneg %p121
      $region26: #{double_conv.5} parent=11 // pred_check_branch
        %173 = sbr.rel (%p171) target = $region28
      $region27: #{double_conv.5} parent=11 // pred_region
        _
      $region28: #{double_conv.5} parent=11 // pred_fallthru
        _
    $region12: #{double_conv.5} parent=5 // pred_fallthru
      _
    %p174 = scmp.lt.s32.totalorder %s11, 2
    // Predicated region
    $region29: #{double_conv.5} parent=5 // pred_check
      %p175 = pneg %p174
    $region30: #{double_conv.5} parent=5 // pred_check_branch
      %177 = sbr.rel (%p175) target = $region32
    $region31: #{double_conv.5} parent=5 // pred_region
      // Predicated region
      $region33: #{double_conv.5} parent=31 // pred_check
        %p178 = pneg %p31
      $region34: #{double_conv.5} parent=31 // pred_check_branch
        %180 = sbr.rel (%p178) target = $region36
      $region35: #{double_conv.5} parent=31 // pred_region
        %s181 = smul.u32 32, %s11
        %p182 = scmp.lt.s32.totalorder %s181, 63
        %s183 = scalar_select %p182, %s181, 63
        %s184 = smul.addr %s183, 8
        %s185 = scalar_lea.vmem %s0, %s184
        %s186 = smul.u32 32, %s11
      $region36: #{double_conv.5} parent=31 // pred_fallthru
        _
    $region32: #{double_conv.5} parent=5 // pred_fallthru
      _
    %p187 = scmp.le.s32.totalorder 1, %s11
    %p188 = scmp.lt.s32.totalorder %s11, 3
    %p189 = pnand %p187, %p188
    %p190 = pneg %p189
    // Predicated region
    $region37: #{double_conv.5} parent=5 // pred_check
      _
    $region38: #{double_conv.5} parent=5 // pred_check_branch
      %192 = sbr.rel (%p189) target = $region40
    $region39: #{double_conv.5} parent=5 // pred_region
      %s193 = ssub.s32 %s11, 1
      %s194 = smul.u32 32, %s16
      %p195 = scmp.lt.s32.totalorder %s194, 63
      %s196 = scalar_select %p195, %s194, 63
      %s197 = smul.addr %s196, 8
      %s198 = scalar_lea.vmem %s0, %s197
      %p199 = pneg %p37
      %p200 = pneg %p34
      %p201 = pneg %p58
      %p202 = pneg %p55
      %p203 = pneg %p79
      %p204 = pneg %p76
      %p205 = pneg %p100
      %p206 = pneg %p97
      %p207 = pneg %p121
      %p208 = pneg %p118
      %p209 = pneg %p147
      %p210 = pneg %p144
      %s211 = smul.u32 32, %s16
      %p212 = scmp.lt.s32.totalorder %s211, 63
      %s213 = scalar_select %p212, %s211, 63
      %s214 = smul.addr %s213, 8
      %s215 = scalar_lea.vmem %s5, %s214
      %s216 = smul.u32 32, %s16
      %p217 = scmp.lt.s32.totalorder %s216, 63
      %s218 = scalar_select %p217, %s216, 63
      %s219 = smul.addr %s218, 8
      %s220 = scalar_lea.vmem %s0, %s219
      %s221 = smul.u32 32, %s16
      %s222 = smul.u32 32, %s16
      %p223 = scmp.lt.s32.totalorder %s222, 63
      %s224 = scalar_select %p223, %s222, 63
      %s225 = smul.addr %s224, 8
      %s226 = scalar_lea.vmem %s5, %s225
      %s227 = smul.u32 32, %s16
      %v228 = vld [vmem:[%s220] sm:$0xff]
      %v229 = vld [vmem:[%s220 + $0x8] sm:$0xff]
      %v230 = vld [vmem:[%s220 + $0x10] sm:$0xff]
      %v231 = vld [vmem:[%s220 + $0x18] sm:$0xff]
      %v232 = vld [vmem:[%s220 + $0x20] sm:$0xff]
      %v233 = vld [vmem:[%s220 + $0x28] sm:$0xff]
      %v234 = vld [vmem:[%s220 + $0x30] sm:$0xff]
      %v235 = vld [vmem:[%s220 + $0x38] sm:$0xff]
      %v236 = vld [vmem:[%s220 + $0x40] sm:$0xff]
      %v237 = vld [vmem:[%s220 + $0x48] sm:$0xff]
      %v238 = vld [vmem:[%s220 + $0x50] sm:$0xff]
      %v239 = vld [vmem:[%s220 + $0x58] sm:$0xff]
      %v240 = vld [vmem:[%s220 + $0x60] sm:$0xff]
      %v241 = vld [vmem:[%s220 + $0x68] sm:$0xff]
      %v242 = vld [vmem:[%s220 + $0x70] sm:$0xff]
      %v243 = vld [vmem:[%s220 + $0x78] sm:$0xff]
      %v244 = vld [vmem:[%s220 + $0x80] sm:$0xff]
      %v245 = vld [vmem:[%s220 + $0x88] sm:$0xff]
      %v246 = vld [vmem:[%s220 + $0x90] sm:$0xff]
      %v247 = vld [vmem:[%s220 + $0x98] sm:$0xff]
      %v248 = vld [vmem:[%s220 + $0xa0] sm:$0xff]
      %v249 = vld [vmem:[%s220 + $0xa8] sm:$0xff]
      %v250 = vld [vmem:[%s220 + $0xb0] sm:$0xff]
      %v251 = vld [vmem:[%s220 + $0xb8] sm:$0xff]
      %v252 = vld [vmem:[%s220 + $0xc0] sm:$0xff]
      %v253 = vld [vmem:[%s220 + $0xc8] sm:$0xff]
      %v254 = vld [vmem:[%s220 + $0xd0] sm:$0xff]
      %v255 = vld [vmem:[%s220 + $0xd8] sm:$0xff]
      %v256 = vld [vmem:[%s220 + $0xe0] sm:$0xff]
      %v257 = vld [vmem:[%s220 + $0xe8] sm:$0xff]
      %v258 = vld [vmem:[%s220 + $0xf0] sm:$0xff]
      %v259 = vld [vmem:[%s220 + $0xf8] sm:$0xff]
      %v260 = vld [vmem:[%s3] sm:$0x1]
      %v261 = vld [vmem:[%s2] sm:$0x1]
      %v262 = vadd.f32 %v261, 1e-05
      %v263 = vrsqrt.pop %v262
      %v264 = vmul.f32 %v260, %v263
      %v265 = vld [vmem:[%s1] sm:$0x1]
      %v267 = vlaneseq
      %v268 = vshrl.u32 %v267, 7
      %v269 = vsub.s32 0, %v268
      %v270 = vrot.slane %v265, %v269
      %v272 = vsub.f32 %v228, %v270
      %v273 = vsub.f32 %v229, %v270
      %v274 = vsub.f32 %v230, %v270
      %v275 = vsub.f32 %v231, %v270
      %v276 = vsub.f32 %v232, %v270
      %v277 = vsub.f32 %v233, %v270
      %v278 = vsub.f32 %v234, %v270
      %v279 = vsub.f32 %v235, %v270
      %v280 = vsub.f32 %v236, %v270
      %v281 = vsub.f32 %v237, %v270
      %v282 = vsub.f32 %v238, %v270
      %v283 = vsub.f32 %v239, %v270
      %v284 = vsub.f32 %v240, %v270
      %v285 = vsub.f32 %v241, %v270
      %v286 = vsub.f32 %v242, %v270
      %v287 = vsub.f32 %v243, %v270
      %v288 = vsub.f32 %v244, %v270
      %v289 = vsub.f32 %v245, %v270
      %v290 = vsub.f32 %v246, %v270
      %v291 = vsub.f32 %v247, %v270
      %v292 = vsub.f32 %v248, %v270
      %v293 = vsub.f32 %v249, %v270
      %v294 = vsub.f32 %v250, %v270
      %v295 = vsub.f32 %v251, %v270
      %v296 = vsub.f32 %v252, %v270
      %v297 = vsub.f32 %v253, %v270
      %v298 = vsub.f32 %v254, %v270
      %v299 = vsub.f32 %v255, %v270
      %v300 = vsub.f32 %v256, %v270
      %v301 = vsub.f32 %v257, %v270
      %v302 = vsub.f32 %v258, %v270
      %v303 = vsub.f32 %v259, %v270
      %v305 = vlaneseq
      %v306 = vshrl.u32 %v305, 7
      %v307 = vsub.s32 0, %v306
      %v308 = vrot.slane %v264, %v307
      %v310 = vmul.f32 %v272, %v308
      %v311 = vmul.f32 %v273, %v308
      %v312 = vmul.f32 %v274, %v308
      %v313 = vmul.f32 %v275, %v308
      %v314 = vmul.f32 %v276, %v308
      %v315 = vmul.f32 %v277, %v308
      %v316 = vmul.f32 %v278, %v308
      %v317 = vmul.f32 %v279, %v308
      %v318 = vmul.f32 %v280, %v308
      %v319 = vmul.f32 %v281, %v308
      %v320 = vmul.f32 %v282, %v308
      %v321 = vmul.f32 %v283, %v308
      %v322 = vmul.f32 %v284, %v308
      %v323 = vmul.f32 %v285, %v308
      %v324 = vmul.f32 %v286, %v308
      %v325 = vmul.f32 %v287, %v308
      %v326 = vmul.f32 %v288, %v308
      %v327 = vmul.f32 %v289, %v308
      %v328 = vmul.f32 %v290, %v308
      %v329 = vmul.f32 %v291, %v308
      %v330 = vmul.f32 %v292, %v308
      %v331 = vmul.f32 %v293, %v308
      %v332 = vmul.f32 %v294, %v308
      %v333 = vmul.f32 %v295, %v308
      %v334 = vmul.f32 %v296, %v308
      %v335 = vmul.f32 %v297, %v308
      %v336 = vmul.f32 %v298, %v308
      %v337 = vmul.f32 %v299, %v308
      %v338 = vmul.f32 %v300, %v308
      %v339 = vmul.f32 %v301, %v308
      %v340 = vmul.f32 %v302, %v308
      %v341 = vmul.f32 %v303, %v308
      %v342 = vld [vmem:[%s4] sm:$0x1]
      %v344 = vlaneseq
      %v345 = vshrl.u32 %v344, 7
      %v346 = vsub.s32 0, %v345
      %v347 = vrot.slane %v342, %v346
      %v349 = vadd.f32 %v310, %v347
      %v350 = vadd.f32 %v311, %v347
      %v351 = vadd.f32 %v312, %v347
      %v352 = vadd.f32 %v313, %v347
      %v353 = vadd.f32 %v314, %v347
      %v354 = vadd.f32 %v315, %v347
      %v355 = vadd.f32 %v316, %v347
      %v356 = vadd.f32 %v317, %v347
      %v357 = vadd.f32 %v318, %v347
      %v358 = vadd.f32 %v319, %v347
      %v359 = vadd.f32 %v320, %v347
      %v360 = vadd.f32 %v321, %v347
      %v361 = vadd.f32 %v322, %v347
      %v362 = vadd.f32 %v323, %v347
      %v363 = vadd.f32 %v324, %v347
      %v364 = vadd.f32 %v325, %v347
      %v365 = vadd.f32 %v326, %v347
      %v366 = vadd.f32 %v327, %v347
      %v367 = vadd.f32 %v328, %v347
      %v368 = vadd.f32 %v329, %v347
      %v369 = vadd.f32 %v330, %v347
      %v370 = vadd.f32 %v331, %v347
      %v371 = vadd.f32 %v332, %v347
      %v372 = vadd.f32 %v333, %v347
      %v373 = vadd.f32 %v334, %v347
      %v374 = vadd.f32 %v335, %v347
      %v375 = vadd.f32 %v336, %v347
      %v376 = vadd.f32 %v337, %v347
      %v377 = vadd.f32 %v338, %v347
      %v378 = vadd.f32 %v339, %v347
      %v379 = vadd.f32 %v340, %v347
      %v380 = vadd.f32 %v341, %v347
      %vm381 = vcmp.ge.f32.partialorder %v349, 0.0
      %vm382 = vcmp.ge.f32.partialorder %v350, 0.0
      %vm383 = vcmp.ge.f32.partialorder %v351, 0.0
      %vm384 = vcmp.ge.f32.partialorder %v352, 0.0
      %vm385 = vcmp.ge.f32.partialorder %v353, 0.0
      %vm386 = vcmp.ge.f32.partialorder %v354, 0.0
      %vm387 = vcmp.ge.f32.partialorder %v355, 0.0
      %vm388 = vcmp.ge.f32.partialorder %v356, 0.0
      %vm389 = vcmp.ge.f32.partialorder %v357, 0.0
      %vm390 = vcmp.ge.f32.partialorder %v358, 0.0
      %vm391 = vcmp.ge.f32.partialorder %v359, 0.0
      %vm392 = vcmp.ge.f32.partialorder %v360, 0.0
      %vm393 = vcmp.ge.f32.partialorder %v361, 0.0
      %vm394 = vcmp.ge.f32.partialorder %v362, 0.0
      %vm395 = vcmp.ge.f32.partialorder %v363, 0.0
      %vm396 = vcmp.ge.f32.partialorder %v364, 0.0
      %vm397 = vcmp.ge.f32.partialorder %v365, 0.0
      %vm398 = vcmp.ge.f32.partialorder %v366, 0.0
      %vm399 = vcmp.ge.f32.partialorder %v367, 0.0
      %vm400 = vcmp.ge.f32.partialorder %v368, 0.0
      %vm401 = vcmp.ge.f32.partialorder %v369, 0.0
      %vm402 = vcmp.ge.f32.partialorder %v370, 0.0
      %vm403 = vcmp.ge.f32.partialorder %v371, 0.0
      %vm404 = vcmp.ge.f32.partialorder %v372, 0.0
      %vm405 = vcmp.ge.f32.partialorder %v373, 0.0
      %vm406 = vcmp.ge.f32.partialorder %v374, 0.0
      %vm407 = vcmp.ge.f32.partialorder %v375, 0.0
      %vm408 = vcmp.ge.f32.partialorder %v376, 0.0
      %vm409 = vcmp.ge.f32.partialorder %v377, 0.0
      %vm410 = vcmp.ge.f32.partialorder %v378, 0.0
      %vm411 = vcmp.ge.f32.partialorder %v379, 0.0
      %vm412 = vcmp.ge.f32.partialorder %v380, 0.0
      %v413 = vmul.f32 %v349, 0.1
      %v414 = vmul.f32 %v350, 0.1
      %v415 = vmul.f32 %v351, 0.1
      %v416 = vmul.f32 %v352, 0.1
      %v417 = vmul.f32 %v353, 0.1
      %v418 = vmul.f32 %v354, 0.1
      %v419 = vmul.f32 %v355, 0.1
      %v420 = vmul.f32 %v356, 0.1
      %v421 = vmul.f32 %v357, 0.1
      %v422 = vmul.f32 %v358, 0.1
      %v423 = vmul.f32 %v359, 0.1
      %v424 = vmul.f32 %v360, 0.1
      %v425 = vmul.f32 %v361, 0.1
      %v426 = vmul.f32 %v362, 0.1
      %v427 = vmul.f32 %v363, 0.1
      %v428 = vmul.f32 %v364, 0.1
      %v429 = vmul.f32 %v365, 0.1
      %v430 = vmul.f32 %v366, 0.1
      %v431 = vmul.f32 %v367, 0.1
      %v432 = vmul.f32 %v368, 0.1
      %v433 = vmul.f32 %v369, 0.1
      %v434 = vmul.f32 %v370, 0.1
      %v435 = vmul.f32 %v371, 0.1
      %v436 = vmul.f32 %v372, 0.1
      %v437 = vmul.f32 %v373, 0.1
      %v438 = vmul.f32 %v374, 0.1
      %v439 = vmul.f32 %v375, 0.1
      %v440 = vmul.f32 %v376, 0.1
      %v441 = vmul.f32 %v377, 0.1
      %v442 = vmul.f32 %v378, 0.1
      %v443 = vmul.f32 %v379, 0.1
      %v444 = vmul.f32 %v380, 0.1
      %v445 = vsel %vm381, %v349, %v413
      %v446 = vsel %vm382, %v350, %v414
      %v447 = vsel %vm383, %v351, %v415
      %v448 = vsel %vm384, %v352, %v416
      %v449 = vsel %vm385, %v353, %v417
      %v450 = vsel %vm386, %v354, %v418
      %v451 = vsel %vm387, %v355, %v419
      %v452 = vsel %vm388, %v356, %v420
      %v453 = vsel %vm389, %v357, %v421
      %v454 = vsel %vm390, %v358, %v422
      %v455 = vsel %vm391, %v359, %v423
      %v456 = vsel %vm392, %v360, %v424
      %v457 = vsel %vm393, %v361, %v425
      %v458 = vsel %vm394, %v362, %v426
      %v459 = vsel %vm395, %v363, %v427
      %v460 = vsel %vm396, %v364, %v428
      %v461 = vsel %vm397, %v365, %v429
      %v462 = vsel %vm398, %v366, %v430
      %v463 = vsel %vm399, %v367, %v431
      %v464 = vsel %vm400, %v368, %v432
      %v465 = vsel %vm401, %v369, %v433
      %v466 = vsel %vm402, %v370, %v434
      %v467 = vsel %vm403, %v371, %v435
      %v468 = vsel %vm404, %v372, %v436
      %v469 = vsel %vm405, %v373, %v437
      %v470 = vsel %vm406, %v374, %v438
      %v471 = vsel %vm407, %v375, %v439
      %v472 = vsel %vm408, %v376, %v440
      %v473 = vsel %vm409, %v377, %v441
      %v474 = vsel %vm410, %v378, %v442
      %v475 = vsel %vm411, %v379, %v443
      %v476 = vsel %vm412, %v380, %v444
      %477 = vst [vmem:[%s226] sm:$0xff] %v445
      %478 = vst [vmem:[%s226 + $0x8] sm:$0xff] %v446
      %479 = vst [vmem:[%s226 + $0x10] sm:$0xff] %v447
      %480 = vst [vmem:[%s226 + $0x18] sm:$0xff] %v448
      %481 = vst [vmem:[%s226 + $0x20] sm:$0xff] %v449
      %482 = vst [vmem:[%s226 + $0x28] sm:$0xff] %v450
      %483 = vst [vmem:[%s226 + $0x30] sm:$0xff] %v451
      %484 = vst [vmem:[%s226 + $0x38] sm:$0xff] %v452
      %485 = vst [vmem:[%s226 + $0x40] sm:$0xff] %v453
      %486 = vst [vmem:[%s226 + $0x48] sm:$0xff] %v454
      %487 = vst [vmem:[%s226 + $0x50] sm:$0xff] %v455
      %488 = vst [vmem:[%s226 + $0x58] sm:$0xff] %v456
      %489 = vst [vmem:[%s226 + $0x60] sm:$0xff] %v457
      %490 = vst [vmem:[%s226 + $0x68] sm:$0xff] %v458
      %491 = vst [vmem:[%s226 + $0x70] sm:$0xff] %v459
      %492 = vst [vmem:[%s226 + $0x78] sm:$0xff] %v460
      %493 = vst [vmem:[%s226 + $0x80] sm:$0xff] %v461
      %494 = vst [vmem:[%s226 + $0x88] sm:$0xff] %v462
      %495 = vst [vmem:[%s226 + $0x90] sm:$0xff] %v463
      %496 = vst [vmem:[%s226 + $0x98] sm:$0xff] %v464
      %497 = vst [vmem:[%s226 + $0xa0] sm:$0xff] %v465
      %498 = vst [vmem:[%s226 + $0xa8] sm:$0xff] %v466
      %499 = vst [vmem:[%s226 + $0xb0] sm:$0xff] %v467
      %500 = vst [vmem:[%s226 + $0xb8] sm:$0xff] %v468
      %501 = vst [vmem:[%s226 + $0xc0] sm:$0xff] %v469
      %502 = vst [vmem:[%s226 + $0xc8] sm:$0xff] %v470
      %503 = vst [vmem:[%s226 + $0xd0] sm:$0xff] %v471
      %504 = vst [vmem:[%s226 + $0xd8] sm:$0xff] %v472
      %505 = vst [vmem:[%s226 + $0xe0] sm:$0xff] %v473
      %506 = vst [vmem:[%s226 + $0xe8] sm:$0xff] %v474
      %507 = vst [vmem:[%s226 + $0xf0] sm:$0xff] %v475
      %508 = vst [vmem:[%s226 + $0xf8] sm:$0xff] %v476
      %s509 = smul.u32 32, %s16
      %p510 = scmp.lt.s32.totalorder %s509, 63
      %s511 = scalar_select %p510, %s509, 63
      %s512 = smul.addr %s511, 8
      %s513 = scalar_lea.vmem %s5, %s512
      // Predicated region
      $region41: #{double_conv.5} parent=39 // pred_check
        %p514 = pneg %p144
      $region42: #{double_conv.5} parent=39 // pred_check_branch
        %516 = sbr.rel (%p514) target = $region44
      $region43: #{double_conv.5} parent=39 // pred_region
        %s517 = smul.u32 32, %s16
      $region44: #{double_conv.5} parent=39 // pred_fallthru
        _
    $region40: #{double_conv.5} parent=5 // pred_fallthru
      _
    %p518 = scmp.le.s32.totalorder 2, %s11
    // Predicated region
    $region45: #{double_conv.5} parent=5 // pred_check
      %p519 = pneg %p518
    $region46: #{double_conv.5} parent=5 // pred_check_branch
      %521 = sbr.rel (%p519) target = $region48
    $region47: #{double_conv.5} parent=5 // pred_region
      %s522 = ssub.s32 %s11, 2
      // Predicated region
      $region49: #{double_conv.5} parent=47 // pred_check
        %p523 = pneg %p150
      $region50: #{double_conv.5} parent=47 // pred_check_branch
        %525 = sbr.rel (%p523) target = $region52
      $region51: #{double_conv.5} parent=47 // pred_region
        %s526 = smul.u32 32, %s17
        %p527 = scmp.lt.s32.totalorder %s526, 63
        %s528 = scalar_select %p527, %s526, 63
        %s529 = smul.addr %s528, 8
        %s530 = scalar_lea.vmem %s5, %s529
      $region52: #{double_conv.5} parent=47 // pred_fallthru
        _
    $region48: #{double_conv.5} parent=5 // pred_fallthru
      _
  $region6: #{double_conv.5} parent=0 // loop_footer
    %s15 = sadd.s32 1, %s11
  $region7: #{double_conv.5} parent=0 // loop_footer_branch
    %10 = sbr.rel target = $region3
  $region8: #{double_conv.5} parent=0 // loop_exit
    _

// kernel: double_conv.4
$region0: #{double_conv.4}
  #allocation0 [shape = 'u32[]', space=smem, size = 0x4, offset = 0x4, fixed_abs, tag = 'smem constant byte address 0x4 - core index']
  #allocation1 [shape = 'u32[144,128]{1,0:T(1,128)}', space=vmem, size = 0x12000, scoped, tag = 'internal scratch']
  %s0 = inlined_call_operand.vmem [shape: f32[512,36], index: 0, kind: input, shape index: {}]
  %s1 = inlined_call_operand.vmem [shape: f32[36,128], index: 1, kind: input, shape index: {}]
  %s2 = inlined_call_operand.vmem [shape: f32[512,128], index: 2, kind: output, shape index: {0}]
  %s3 = inlined_call_operand.vmem [shape: f32[1,128], index: 3, kind: output, shape index: {1}]
  %s4 = inlined_call_operand.vmem [shape: f32[1,128], index: 4, kind: output, shape index: {2}]
  %5 = xla_tuple %s2, %s3, %s4
  %s6 = sld [smem:[#allocation0]]
  $region65: #{double_conv.4} parent=0
    _
  %s8 = ssub.s32 1, %s6
  %s9 = scalar_select 0, %s8, %s6
  loop: start=0, step=1, limit=4
  $region2: #{double_conv.4} parent=0 // loop_pre_header
    _
  $region3: #{double_conv.4} parent=0 // loop_header
    %s11 = sphi 0, %s15
    %p12 = scmp.ge.s32.totalorder %s11, 4
    %s21 = sphi 0, %s23
    %s24 = sphi 0, %s21
    %s25 = sphi 0, %s24
    %s41 = sphi 0, %s25
    %s45 = sphi 0, %s45
    %s47 = sphi 0, %s45
    %s48 = sphi 0, %s47
    %s62 = sphi 0, %s48
    %s68 = sphi 0, %s70
    %s71 = sphi 0, %s68
    %s72 = sphi 0, %s71
    %s88 = sphi 0, %s72
    %s92 = sphi 0, %s92
    %s94 = sphi 0, %s92
    %s95 = sphi 0, %s94
    %s109 = sphi 0, %s95
    %s113 = sphi 0, %s113
    %s115 = sphi 0, %s113
    %s116 = sphi 0, %s115
    %s130 = sphi 0, %s116
  $region4: #{double_conv.4} parent=0 // loop_header_branch
    %14 = sbr.rel (%p12) target = $region8
  $region5: #{double_conv.4} parent=0 // loop_body
    %s16 = ssub.s32 %s11, 1
    %s17 = ssub.s32 %s11, 2
    %s18 = sadd.s32 %s11, 1
    %s19 = ssub.s32 %s11, %s18
    %p20 = scmp.eq.s32.totalorder %s19, 0
    %s22 = sadd.s32 %s21, 1
    %s23 = scalar_select %p20, %s21, %s22
    %p26 = pneg %p20
    %p27 = scmp.eq.s32.totalorder %s11, 1
    %p28 = por %p26, %p27
    %p29 = scmp.ne.s32.totalorder %s21, %s24
    %p30 = scmp.eq.s32.totalorder %s11, 0
    %p31 = por %p29, %p30
    %p32 = scmp.ne.s32.totalorder %s21, %s24
    %p33 = scmp.eq.s32.totalorder %s16, 1
    %p34 = por %p32, %p33
    %p35 = scmp.ne.s32.totalorder %s24, %s25
    %p36 = scmp.eq.s32.totalorder %s16, 0
    %p37 = por %p35, %p36
    %p38 = scmp.ne.s32.totalorder %s24, %s25
    %p39 = scmp.eq.s32.totalorder %s17, 1
    %p40 = por %p38, %p39
    %p42 = scmp.ne.s32.totalorder %s25, %s41
    %p43 = scmp.eq.s32.totalorder %s17, 0
    %p44 = por %p42, %p43
    %s46 = sadd.s32 %s45, 1
    %p49 = scmp.eq.s32.totalorder %s11, 1
    %p50 = scmp.ne.s32.totalorder %s45, %s47
    %p51 = scmp.eq.s32.totalorder %s11, 0
    %p52 = por %p50, %p51
    %p53 = scmp.ne.s32.totalorder %s45, %s47
    %p54 = scmp.eq.s32.totalorder %s16, 1
    %p55 = por %p53, %p54
    %p56 = scmp.ne.s32.totalorder %s47, %s48
    %p57 = scmp.eq.s32.totalorder %s16, 0
    %p58 = por %p56, %p57
    %p59 = scmp.ne.s32.totalorder %s47, %s48
    %p60 = scmp.eq.s32.totalorder %s17, 1
    %p61 = por %p59, %p60
    %p63 = scmp.ne.s32.totalorder %s48, %s62
    %p64 = scmp.eq.s32.totalorder %s17, 0
    %p65 = por %p63, %p64
    %s66 = ssub.s32 %s11, %s18
    %p67 = scmp.eq.s32.totalorder %s66, 0
    %s69 = sadd.s32 %s68, 1
    %s70 = scalar_select %p67, %s68, %s69
    %p73 = pneg %p67
    %p74 = scmp.eq.s32.totalorder %s11, 1
    %p75 = por %p73, %p74
    %p76 = scmp.ne.s32.totalorder %s68, %s71
    %p77 = scmp.eq.s32.totalorder %s11, 0
    %p78 = por %p76, %p77
    %p79 = scmp.ne.s32.totalorder %s68, %s71
    %p80 = scmp.eq.s32.totalorder %s16, 1
    %p81 = por %p79, %p80
    %p82 = scmp.ne.s32.totalorder %s71, %s72
    %p83 = scmp.eq.s32.totalorder %s16, 0
    %p84 = por %p82, %p83
    %p85 = scmp.ne.s32.totalorder %s71, %s72
    %p86 = scmp.eq.s32.totalorder %s17, 1
    %p87 = por %p85, %p86
    %p89 = scmp.ne.s32.totalorder %s72, %s88
    %p90 = scmp.eq.s32.totalorder %s17, 0
    %p91 = por %p89, %p90
    %s93 = sadd.s32 %s92, 1
    %p96 = scmp.eq.s32.totalorder %s11, 1
    %p97 = scmp.ne.s32.totalorder %s92, %s94
    %p98 = scmp.eq.s32.totalorder %s11, 0
    %p99 = por %p97, %p98
    %p100 = scmp.ne.s32.totalorder %s92, %s94
    %p101 = scmp.eq.s32.totalorder %s16, 1
    %p102 = por %p100, %p101
    %p103 = scmp.ne.s32.totalorder %s94, %s95
    %p104 = scmp.eq.s32.totalorder %s16, 0
    %p105 = por %p103, %p104
    %p106 = scmp.ne.s32.totalorder %s94, %s95
    %p107 = scmp.eq.s32.totalorder %s17, 1
    %p108 = por %p106, %p107
    %p110 = scmp.ne.s32.totalorder %s95, %s109
    %p111 = scmp.eq.s32.totalorder %s17, 0
    %p112 = por %p110, %p111
    %s114 = sadd.s32 %s113, 1
    %p117 = scmp.eq.s32.totalorder %s11, 1
    %p118 = scmp.ne.s32.totalorder %s113, %s115
    %p119 = scmp.eq.s32.totalorder %s11, 0
    %p120 = por %p118, %p119
    %p121 = scmp.ne.s32.totalorder %s113, %s115
    %p122 = scmp.eq.s32.totalorder %s16, 1
    %p123 = por %p121, %p122
    %p124 = scmp.ne.s32.totalorder %s115, %s116
    %p125 = scmp.eq.s32.totalorder %s16, 0
    %p126 = por %p124, %p125
    %p127 = scmp.ne.s32.totalorder %s115, %s116
    %p128 = scmp.eq.s32.totalorder %s17, 1
    %p129 = por %p127, %p128
    %p131 = scmp.ne.s32.totalorder %s116, %s130
    %p132 = scmp.eq.s32.totalorder %s17, 0
    %p133 = por %p131, %p132
    %p134 = scmp.le.s32.totalorder 1, %s11
    %p135 = scmp.lt.s32.totalorder %s11, 3
    %p136 = pnand %p134, %p135
    %p137 = pneg %p136
    // Predicated region
    $region9: #{double_conv.4} parent=5 // pred_check
      _
    $region10: #{double_conv.4} parent=5 // pred_check_branch
      %139 = sbr.rel (%p136) target = $region12
    $region11: #{double_conv.4} parent=5 // pred_region
      %s140 = ssub.s32 %s11, 1
      // Predicated region
      $region13: #{double_conv.4} parent=11 // pred_check
        %p141 = pneg %p58
      $region14: #{double_conv.4} parent=11 // pred_check_branch
        %143 = sbr.rel (%p141) target = $region16
      $region15: #{double_conv.4} parent=11 // pred_region
        _
      $region16: #{double_conv.4} parent=11 // pred_fallthru
        _
    $region12: #{double_conv.4} parent=5 // pred_fallthru
      _
    %p144 = scmp.lt.s32.totalorder %s11, 2
    // Predicated region
    $region17: #{double_conv.4} parent=5 // pred_check
      %p145 = pneg %p144
    $region18: #{double_conv.4} parent=5 // pred_check_branch
      %147 = sbr.rel (%p145) target = $region20
    $region19: #{double_conv.4} parent=5 // pred_region
      // Predicated region
      $region21: #{double_conv.4} parent=19 // pred_check
        %p148 = pneg %p31
      $region22: #{double_conv.4} parent=19 // pred_check_branch
        %150 = sbr.rel (%p148) target = $region24
      $region23: #{double_conv.4} parent=19 // pred_region
        %s151 = smul.u32 32, %s11
        %p152 = scmp.lt.s32.totalorder %s151, 63
        %s153 = scalar_select %p152, %s151, 63
        %s154 = smul.addr %s153, 8
        %s155 = scalar_lea.vmem %s0, %s154
        %s156 = smul.u32 32, %s11
      $region24: #{double_conv.4} parent=19 // pred_fallthru
        _
    $region20: #{double_conv.4} parent=5 // pred_fallthru
      _
    %p157 = scmp.le.s32.totalorder 1, %s11
    %p158 = scmp.lt.s32.totalorder %s11, 3
    %p159 = pnand %p157, %p158
    %p160 = pneg %p159
    // Predicated region
    $region25: #{double_conv.4} parent=5 // pred_check
      _
    $region26: #{double_conv.4} parent=5 // pred_check_branch
      %162 = sbr.rel (%p159) target = $region28
    $region27: #{double_conv.4} parent=5 // pred_region
      %s163 = ssub.s32 %s11, 1
      %s164 = smul.u32 32, %s16
      %p165 = scmp.lt.s32.totalorder %s164, 63
      %s166 = scalar_select %p165, %s164, 63
      %s167 = smul.addr %s166, 8
      %s168 = scalar_lea.vmem %s0, %s167
      %p169 = pneg %p37
      %p170 = pneg %p34
      %p171 = pneg %p58
      %p172 = pneg %p55
      %p173 = pneg %p84
      %p174 = pneg %p81
      %s175 = smul.u32 32, %s16
      %p176 = scmp.lt.s32.totalorder %s175, 63
      %s177 = scalar_select %p176, %s175, 63
      %s178 = smul.addr %s177, 8
      %s179 = scalar_lea.vmem %s2, %s178
      %p180 = pneg %p105
      %p181 = pneg %p102
      %p182 = pneg %p126
      %p183 = pneg %p123
      %s184 = smul.u32 32, %s16
      %p185 = scmp.lt.s32.totalorder %s184, 63
      %s186 = scalar_select %p185, %s184, 63
      %s187 = smul.addr %s186, 8
      %s188 = scalar_lea.vmem %s0, %s187
      %s189 = smul.u32 32, %s16
      %s190 = smul.u32 32, %s16
      %p191 = scmp.lt.s32.totalorder %s190, 63
      %s192 = scalar_select %p191, %s190, 63
      %s193 = smul.addr %s192, 8
      %s194 = scalar_lea.vmem %s2, %s193
      %s195 = smul.u32 32, %s16
      %p196 = scmp.eq.s32.totalorder %s16, 0
      // Predicated region
      $region29: #{double_conv.4} parent=27 // pred_check
        %p197 = pneg %p196
      $region30: #{double_conv.4} parent=27 // pred_check_branch
        %199 = sbr.rel (%p197) target = $region32
      $region31: #{double_conv.4} parent=27 // pred_region
        %200 = vst [vmem:[%s3] sm:$0x1] 0.0
        %201 = vst [vmem:[%s4] sm:$0x1] 0.0
      $region32: #{double_conv.4} parent=27 // pred_fallthru
        _
      %v202 = vld [vmem:[%s188] sm:$0xff]
      %v203 = vld [vmem:[%s188 + $0x8] sm:$0xff]
      %v204 = vld [vmem:[%s188 + $0x10] sm:$0xff]
      %v205 = vld [vmem:[%s188 + $0x18] sm:$0xff]
      %v206 = vld [vmem:[%s188 + $0x20] sm:$0xff]
      %v207 = vld [vmem:[%s188 + $0x28] sm:$0xff]
      %v208 = vld [vmem:[%s188 + $0x30] sm:$0xff]
      %v209 = vld [vmem:[%s188 + $0x38] sm:$0xff]
      %v210 = vld [vmem:[%s188 + $0x40] sm:$0xff]
      %v211 = vld [vmem:[%s188 + $0x48] sm:$0xff]
      %v212 = vld [vmem:[%s188 + $0x50] sm:$0xff]
      %v213 = vld [vmem:[%s188 + $0x58] sm:$0xff]
      %v214 = vld [vmem:[%s188 + $0x60] sm:$0xff]
      %v215 = vld [vmem:[%s188 + $0x68] sm:$0xff]
      %v216 = vld [vmem:[%s188 + $0x70] sm:$0xff]
      %v217 = vld [vmem:[%s188 + $0x78] sm:$0xff]
      %v218 = vld [vmem:[%s188 + $0x80] sm:$0xff]
      %v219 = vld [vmem:[%s188 + $0x88] sm:$0xff]
      %v220 = vld [vmem:[%s188 + $0x90] sm:$0xff]
      %v221 = vld [vmem:[%s188 + $0x98] sm:$0xff]
      %v222 = vld [vmem:[%s188 + $0xa0] sm:$0xff]
      %v223 = vld [vmem:[%s188 + $0xa8] sm:$0xff]
      %v224 = vld [vmem:[%s188 + $0xb0] sm:$0xff]
      %v225 = vld [vmem:[%s188 + $0xb8] sm:$0xff]
      %v226 = vld [vmem:[%s188 + $0xc0] sm:$0xff]
      %v227 = vld [vmem:[%s188 + $0xc8] sm:$0xff]
      %v228 = vld [vmem:[%s188 + $0xd0] sm:$0xff]
      %v229 = vld [vmem:[%s188 + $0xd8] sm:$0xff]
      %v230 = vld [vmem:[%s188 + $0xe0] sm:$0xff]
      %v231 = vld [vmem:[%s188 + $0xe8] sm:$0xff]
      %v232 = vld [vmem:[%s188 + $0xf0] sm:$0xff]
      %v233 = vld [vmem:[%s188 + $0xf8] sm:$0xff]
      %v234 = vld [vmem:[%s1] sm:$0xff]
      %v235 = vld [vmem:[%s1 + $0x8] sm:$0xff]
      %v236 = vld [vmem:[%s1 + $0x10] sm:$0xff]
      %v237 = vld [vmem:[%s1 + $0x18] sm:$0xff]
      %v238 = vld [vmem:[%s1 + $0x20] sm:$0xf]
      %vm239 = vcmask 293888
      %v241 = vsel %vm239, %v202, 0
      %v244 = vsel %vm239, %v203, 0
      %v247 = vsel %vm239, %v204, 0
      %v250 = vsel %vm239, %v205, 0
      %v253 = vsel %vm239, %v206, 0
      %v256 = vsel %vm239, %v207, 0
      %v259 = vsel %vm239, %v208, 0
      %v262 = vsel %vm239, %v209, 0
      %v265 = vsel %vm239, %v210, 0
      %v268 = vsel %vm239, %v211, 0
      %v271 = vsel %vm239, %v212, 0
      %v274 = vsel %vm239, %v213, 0
      %v277 = vsel %vm239, %v214, 0
      %v280 = vsel %vm239, %v215, 0
      %v283 = vsel %vm239, %v216, 0
      %v286 = vsel %vm239, %v217, 0
      %v289 = vsel %vm239, %v218, 0
      %v292 = vsel %vm239, %v219, 0
      %v295 = vsel %vm239, %v220, 0
      %v298 = vsel %vm239, %v221, 0
      %v301 = vsel %vm239, %v222, 0
      %v304 = vsel %vm239, %v223, 0
      %v307 = vsel %vm239, %v224, 0
      %v310 = vsel %vm239, %v225, 0
      %v313 = vsel %vm239, %v226, 0
      %v316 = vsel %vm239, %v227, 0
      %v319 = vsel %vm239, %v228, 0
      %v322 = vsel %vm239, %v229, 0
      %v325 = vsel %vm239, %v230, 0
      %v328 = vsel %vm239, %v231, 0
      %v331 = vsel %vm239, %v232, 0
      %v334 = vsel %vm239, %v233, 0
      %vm336 = vcmask 1043456
      %v338 = vsel %vm336, %v238, 0
      %340 = vmatprep.subr.mxu0 0.0
      %341 = vmatpush1.msra.mxu0 %v234
      %342 = vmatprep.subr.mxu0 0.0
      %343 = vmatpush1.msra.mxu0 %v235
      %344 = vmatprep.subr.mxu0 0.0
      %345 = vmatpush1.msra.mxu0 %v236
      %346 = vmatprep.subr.mxu0 0.0
      %347 = vmatpush1.msra.mxu0 %v237
      %348 = vmatprep.subr.mxu0 0.0
      %349 = vmatpush1.msra.mxu0 %v338
      %350 = vmatprep.subr.mxu0 0.0
      %351 = vmatpush1.msra.mxu0 0.0
      %352 = vmatprep.subr.mxu0 0.0
      %353 = vmatpush1.msra.mxu0 0.0
      %354 = vmatprep.subr.mxu0 0.0
      %355 = vmatpush1.msra.mxu0 0.0
      %356 = vmatprep.subr.mxu0 0.0
      %357 = vmatpush1.msra.mxu0 0.0
      %358 = vmatprep.subr.mxu0 0.0
      %359 = vmatpush1.msra.mxu0 0.0
      %360 = vmatprep.subr.mxu0 0.0
      %361 = vmatpush1.msra.mxu0 0.0
      %362 = vmatprep.subr.mxu0 0.0
      %363 = vmatpush1.msra.mxu0 0.0
      %364 = vmatprep.subr.mxu0 0.0
      %365 = vmatpush1.msra.mxu0 0.0
      %366 = vmatprep.subr.mxu0 0.0
      %367 = vmatpush1.msra.mxu0 0.0
      %368 = vmatprep.subr.mxu0 0.0
      %369 = vmatpush1.msra.mxu0 0.0
      %370 = vmatprep.subr.mxu0 0.0
      %371 = vmatpush1.msra.mxu0 0.0
      %372 = vmatprep.subr.mxu0 0.0
      %373 = vmatpush1.msra.mxu0 0.0
      %374 = vmatprep.subr.mxu0 0.0
      %375 = vmatpush1.msra.mxu0 0.0
      %376 = vmatprep.subr.mxu0 0.0
      %377 = vmatpush1.msra.mxu0 0.0
      %378 = vmatprep.subr.mxu0 0.0
      %379 = vmatpush1.msra.mxu0 0.0
      %380 = vmatprep.subr.mxu0 0.0
      %381 = vmatpush1.msra.mxu0 0.0
      %382 = vmatprep.subr.mxu0 0.0
      %383 = vmatpush1.msra.mxu0 0.0
      %384 = vmatprep.subr.mxu0 0.0
      %385 = vmatpush1.msra.mxu0 0.0
      %386 = vmatprep.subr.mxu0 0.0
      %387 = vmatpush1.msra.mxu0 0.0
      %388 = vmatprep.subr.mxu0 0.0
      %389 = vmatpush1.msra.mxu0 0.0
      %390 = vmatprep.subr.mxu0 0.0
      %391 = vmatpush1.msra.mxu0 0.0
      %392 = vmatprep.subr.mxu0 0.0
      %393 = vmatpush1.msra.mxu0 0.0
      %394 = vmatprep.subr.mxu0 0.0
      %395 = vmatpush1.msra.mxu0 0.0
      %396 = vmatprep.subr.mxu0 0.0
      %397 = vmatpush1.msra.mxu0 0.0
      %398 = vmatprep.subr.mxu0 0.0
      %399 = vmatpush1.msra.mxu0 0.0
      %400 = vmatprep.subr.mxu0 0.0
      %401 = vmatpush1.msra.mxu0 0.0
      %402 = vmatprep.subr.mxu0 0.0
      %403 = vmatpush1.msra.mxu0 0.0
      %404 = vmatprep.mubr.f32.mxu0 0.0
      %405 = vmatmul.mubr.f32.gmra.mrb[0].mxu0 %v241
      %v406 = vpop.f32.mrb[0].mxu0
      %v407 = vadd.f32 0.0, %v406
      %v408 = vpop.f32.mrb[0].mxu0
      %409 = vmatprep.mubr.f32.mxu0 0.0
      %410 = vmatmul.mubr.f32.gmra.mrb[0].mxu0 %v244
      %v411 = vpop.f32.mrb[0].mxu0
      %v412 = vadd.f32 0.0, %v411
      %v413 = vpop.f32.mrb[0].mxu0
      %414 = vmatprep.mubr.f32.mxu0 0.0
      %415 = vmatmul.mubr.f32.gmra.mrb[0].mxu0 %v247
      %v416 = vpop.f32.mrb[0].mxu0
      %v417 = vadd.f32 0.0, %v416
      %v418 = vpop.f32.mrb[0].mxu0
      %419 = vmatprep.mubr.f32.mxu0 0.0
      %420 = vmatmul.mubr.f32.gmra.mrb[0].mxu0 %v250
      %v421 = vpop.f32.mrb[0].mxu0
      %v422 = vadd.f32 0.0, %v421
      %v423 = vpop.f32.mrb[0].mxu0
      %424 = vmatprep.mubr.f32.mxu0 0.0
      %425 = vmatmul.mubr.f32.gmra.mrb[0].mxu0 %v253
      %v426 = vpop.f32.mrb[0].mxu0
      %v427 = vadd.f32 0.0, %v426
      %v428 = vpop.f32.mrb[0].mxu0
      %429 = vmatprep.mubr.f32.mxu0 0.0
      %430 = vmatmul.mubr.f32.gmra.mrb[0].mxu0 %v256
      %v431 = vpop.f32.mrb[0].mxu0
      %v432 = vadd.f32 0.0, %v431
      %v433 = vpop.f32.mrb[0].mxu0
      %434 = vmatprep.mubr.f32.mxu0 0.0
      %435 = vmatmul.mubr.f32.gmra.mrb[0].mxu0 %v259
      %v436 = vpop.f32.mrb[0].mxu0
      %v437 = vadd.f32 0.0, %v436
      %v438 = vpop.f32.mrb[0].mxu0
      %439 = vmatprep.mubr.f32.mxu0 0.0
      %440 = vmatmul.mubr.f32.gmra.mrb[0].mxu0 %v262
      %v441 = vpop.f32.mrb[0].mxu0
      %v442 = vadd.f32 0.0, %v441
      %v443 = vpop.f32.mrb[0].mxu0
      %444 = vmatprep.mubr.f32.mxu0 0.0
      %445 = vmatmul.mubr.f32.gmra.mrb[0].mxu0 %v265
      %v446 = vpop.f32.mrb[0].mxu0
      %v447 = vadd.f32 0.0, %v446
      %v448 = vpop.f32.mrb[0].mxu0
      %449 = vmatprep.mubr.f32.mxu0 0.0
      %450 = vmatmul.mubr.f32.gmra.mrb[0].mxu0 %v268
      %v451 = vpop.f32.mrb[0].mxu0
      %v452 = vadd.f32 0.0, %v451
      %v453 = vpop.f32.mrb[0].mxu0
      %454 = vmatprep.mubr.f32.mxu0 0.0
      %455 = vmatmul.mubr.f32.gmra.mrb[0].mxu0 %v271
      %v456 = vpop.f32.mrb[0].mxu0
      %v457 = vadd.f32 0.0, %v456
      %v458 = vpop.f32.mrb[0].mxu0
      %459 = vmatprep.mubr.f32.mxu0 0.0
      %460 = vmatmul.mubr.f32.gmra.mrb[0].mxu0 %v274
      %v461 = vpop.f32.mrb[0].mxu0
      %v462 = vadd.f32 0.0, %v461
      %v463 = vpop.f32.mrb[0].mxu0
      %464 = vmatprep.mubr.f32.mxu0 0.0
      %465 = vmatmul.mubr.f32.gmra.mrb[0].mxu0 %v277
      %v466 = vpop.f32.mrb[0].mxu0
      %v467 = vadd.f32 0.0, %v466
      %v468 = vpop.f32.mrb[0].mxu0
      %469 = vmatprep.mubr.f32.mxu0 0.0
      %470 = vmatmul.mubr.f32.gmra.mrb[0].mxu0 %v280
      %v471 = vpop.f32.mrb[0].mxu0
      %v472 = vadd.f32 0.0, %v471
      %v473 = vpop.f32.mrb[0].mxu0
      %474 = vmatprep.mubr.f32.mxu0 0.0
      %475 = vmatmul.mubr.f32.gmra.mrb[0].mxu0 %v283
      %v476 = vpop.f32.mrb[0].mxu0
      %v477 = vadd.f32 0.0, %v476
      %v478 = vpop.f32.mrb[0].mxu0
      %479 = vmatprep.mubr.f32.mxu0 0.0
      %480 = vmatmul.mubr.f32.gmra.mrb[0].mxu0 %v286
      %v481 = vpop.f32.mrb[0].mxu0
      %v482 = vadd.f32 0.0, %v481
      %v483 = vpop.f32.mrb[0].mxu0
      %484 = vmatprep.mubr.f32.mxu0 0.0
      %485 = vmatmul.mubr.f32.gmra.mrb[0].mxu0 %v289
      %v486 = vpop.f32.mrb[0].mxu0
      %v487 = vadd.f32 0.0, %v486
      %v488 = vpop.f32.mrb[0].mxu0
      %489 = vmatprep.mubr.f32.mxu0 0.0
      %490 = vmatmul.mubr.f32.gmra.mrb[0].mxu0 %v292
      %v491 = vpop.f32.mrb[0].mxu0
      %v492 = vadd.f32 0.0, %v491
      %v493 = vpop.f32.mrb[0].mxu0
      %494 = vmatprep.mubr.f32.mxu0 0.0
      %495 = vmatmul.mubr.f32.gmra.mrb[0].mxu0 %v295
      %v496 = vpop.f32.mrb[0].mxu0
      %v497 = vadd.f32 0.0, %v496
      %v498 = vpop.f32.mrb[0].mxu0
      %499 = vmatprep.mubr.f32.mxu0 0.0
      %500 = vmatmul.mubr.f32.gmra.mrb[0].mxu0 %v298
      %v501 = vpop.f32.mrb[0].mxu0
      %v502 = vadd.f32 0.0, %v501
      %v503 = vpop.f32.mrb[0].mxu0
      %504 = vmatprep.mubr.f32.mxu0 0.0
      %505 = vmatmul.mubr.f32.gmra.mrb[0].mxu0 %v301
      %v506 = vpop.f32.mrb[0].mxu0
      %v507 = vadd.f32 0.0, %v506
      %v508 = vpop.f32.mrb[0].mxu0
      %509 = vmatprep.mubr.f32.mxu0 0.0
      %510 = vmatmul.mubr.f32.gmra.mrb[0].mxu0 %v304
      %v511 = vpop.f32.mrb[0].mxu0
      %v512 = vadd.f32 0.0, %v511
      %v513 = vpop.f32.mrb[0].mxu0
      %514 = vmatprep.mubr.f32.mxu0 0.0
      %515 = vmatmul.mubr.f32.gmra.mrb[0].mxu0 %v307
      %v516 = vpop.f32.mrb[0].mxu0
      %v517 = vadd.f32 0.0, %v516
      %v518 = vpop.f32.mrb[0].mxu0
      %519 = vmatprep.mubr.f32.mxu0 0.0
      %520 = vmatmul.mubr.f32.gmra.mrb[0].mxu0 %v310
      %v521 = vpop.f32.mrb[0].mxu0
      %v522 = vadd.f32 0.0, %v521
      %v523 = vpop.f32.mrb[0].mxu0
      %524 = vmatprep.mubr.f32.mxu0 0.0
      %525 = vmatmul.mubr.f32.gmra.mrb[0].mxu0 %v313
      %v526 = vpop.f32.mrb[0].mxu0
      %v527 = vadd.f32 0.0, %v526
      %v528 = vpop.f32.mrb[0].mxu0
      %529 = vmatprep.mubr.f32.mxu0 0.0
      %530 = vmatmul.mubr.f32.gmra.mrb[0].mxu0 %v316
      %v531 = vpop.f32.mrb[0].mxu0
      %v532 = vadd.f32 0.0, %v531
      %v533 = vpop.f32.mrb[0].mxu0
      %534 = vmatprep.mubr.f32.mxu0 0.0
      %535 = vmatmul.mubr.f32.gmra.mrb[0].mxu0 %v319
      %v536 = vpop.f32.mrb[0].mxu0
      %v537 = vadd.f32 0.0, %v536
      %v538 = vpop.f32.mrb[0].mxu0
      %539 = vmatprep.mubr.f32.mxu0 0.0
      %540 = vmatmul.mubr.f32.gmra.mrb[0].mxu0 %v322
      %v541 = vpop.f32.mrb[0].mxu0
      %v542 = vadd.f32 0.0, %v541
      %v543 = vpop.f32.mrb[0].mxu0
      %544 = vmatprep.mubr.f32.mxu0 0.0
      %545 = vmatmul.mubr.f32.gmra.mrb[0].mxu0 %v325
      %v546 = vpop.f32.mrb[0].mxu0
      %v547 = vadd.f32 0.0, %v546
      %v548 = vpop.f32.mrb[0].mxu0
      %549 = vmatprep.mubr.f32.mxu0 0.0
      %550 = vmatmul.mubr.f32.gmra.mrb[0].mxu0 %v328
      %v551 = vpop.f32.mrb[0].mxu0
      %v552 = vadd.f32 0.0, %v551
      %v553 = vpop.f32.mrb[0].mxu0
      %554 = vmatprep.mubr.f32.mxu0 0.0
      %555 = vmatmul.mubr.f32.gmra.mrb[0].mxu0 %v331
      %v556 = vpop.f32.mrb[0].mxu0
      %v557 = vadd.f32 0.0, %v556
      %v558 = vpop.f32.mrb[0].mxu0
      %559 = vmatprep.mubr.f32.mxu0 0.0
      %560 = vmatmul.mubr.f32.gmra.mrb[0].mxu0 %v334
      %v561 = vpop.f32.mrb[0].mxu0
      %v562 = vadd.f32 0.0, %v561
      %v563 = vpop.f32.mrb[0].mxu0
      %564 = vdwg.mxu0
      %565 = vst [vmem:[%s194] sm:$0xff] %v407
      %566 = vst [vmem:[%s194 + $0x8] sm:$0xff] %v412
      %567 = vst [vmem:[%s194 + $0x10] sm:$0xff] %v417
      %568 = vst [vmem:[%s194 + $0x18] sm:$0xff] %v422
      %569 = vst [vmem:[%s194 + $0x20] sm:$0xff] %v427
      %570 = vst [vmem:[%s194 + $0x28] sm:$0xff] %v432
      %571 = vst [vmem:[%s194 + $0x30] sm:$0xff] %v437
      %572 = vst [vmem:[%s194 + $0x38] sm:$0xff] %v442
      %573 = vst [vmem:[%s194 + $0x40] sm:$0xff] %v447
      %574 = vst [vmem:[%s194 + $0x48] sm:$0xff] %v452
      %575 = vst [vmem:[%s194 + $0x50] sm:$0xff] %v457
      %576 = vst [vmem:[%s194 + $0x58] sm:$0xff] %v462
      %577 = vst [vmem:[%s194 + $0x60] sm:$0xff] %v467
      %578 = vst [vmem:[%s194 + $0x68] sm:$0xff] %v472
      %579 = vst [vmem:[%s194 + $0x70] sm:$0xff] %v477
      %580 = vst [vmem:[%s194 + $0x78] sm:$0xff] %v482
      %581 = vst [vmem:[%s194 + $0x80] sm:$0xff] %v487
      %582 = vst [vmem:[%s194 + $0x88] sm:$0xff] %v492
      %583 = vst [vmem:[%s194 + $0x90] sm:$0xff] %v497
      %584 = vst [vmem:[%s194 + $0x98] sm:$0xff] %v502
      %585 = vst [vmem:[%s194 + $0xa0] sm:$0xff] %v507
      %586 = vst [vmem:[%s194 + $0xa8] sm:$0xff] %v512
      %587 = vst [vmem:[%s194 + $0xb0] sm:$0xff] %v517
      %588 = vst [vmem:[%s194 + $0xb8] sm:$0xff] %v522
      %589 = vst [vmem:[%s194 + $0xc0] sm:$0xff] %v527
      %590 = vst [vmem:[%s194 + $0xc8] sm:$0xff] %v532
      %591 = vst [vmem:[%s194 + $0xd0] sm:$0xff] %v537
      %592 = vst [vmem:[%s194 + $0xd8] sm:$0xff] %v542
      %593 = vst [vmem:[%s194 + $0xe0] sm:$0xff] %v547
      %594 = vst [vmem:[%s194 + $0xe8] sm:$0xff] %v552
      %595 = vst [vmem:[%s194 + $0xf0] sm:$0xff] %v557
      %596 = vst [vmem:[%s194 + $0xf8] sm:$0xff] %v562
      %v597 = vadd.f32 %v407, %v412
      %v598 = vadd.f32 %v597, %v417
      %v599 = vadd.f32 %v598, %v422
      %v600 = vadd.f32 %v599, %v427
      %v601 = vadd.f32 %v600, %v432
      %v602 = vadd.f32 %v601, %v437
      %v603 = vadd.f32 %v602, %v442
      %v604 = vadd.f32 %v603, %v447
      %v605 = vadd.f32 %v604, %v452
      %v606 = vadd.f32 %v605, %v457
      %v607 = vadd.f32 %v606, %v462
      %v608 = vadd.f32 %v607, %v467
      %v609 = vadd.f32 %v608, %v472
      %v610 = vadd.f32 %v609, %v477
      %v611 = vadd.f32 %v610, %v482
      %v612 = vadd.f32 %v611, %v487
      %v613 = vadd.f32 %v612, %v492
      %v614 = vadd.f32 %v613, %v497
      %v615 = vadd.f32 %v614, %v502
      %v616 = vadd.f32 %v615, %v507
      %v617 = vadd.f32 %v616, %v512
      %v618 = vadd.f32 %v617, %v517
      %v619 = vadd.f32 %v618, %v522
      %v620 = vadd.f32 %v619, %v527
      %v621 = vadd.f32 %v620, %v532
      %v622 = vadd.f32 %v621, %v537
      %v623 = vadd.f32 %v622, %v542
      %v624 = vadd.f32 %v623, %v547
      %v625 = vadd.f32 %v624, %v552
      %v626 = vadd.f32 %v625, %v557
      %v627 = vadd.f32 %v626, %v562
      %v628 = vrot.slane %v627, 4
      %v629 = vadd.f32 %v627, %v628
      %v630 = vrot.slane %v629, 2
      %v631 = vadd.f32 %v629, %v630
      %v632 = vrot.slane %v631, 1
      %v633 = vadd.f32 %v631, %v632
      %v634 = vrcp.pop 256.0
      %v635 = vmul.f32 %v633, %v634
      %v636 = vsub.f32 %v407, %v635
      %v637 = vsub.f32 %v412, %v635
      %v638 = vsub.f32 %v417, %v635
      %v639 = vsub.f32 %v422, %v635
      %v640 = vsub.f32 %v427, %v635
      %v641 = vsub.f32 %v432, %v635
      %v642 = vsub.f32 %v437, %v635
      %v643 = vsub.f32 %v442, %v635
      %v644 = vsub.f32 %v447, %v635
      %v645 = vsub.f32 %v452, %v635
      %v646 = vsub.f32 %v457, %v635
      %v647 = vsub.f32 %v462, %v635
      %v648 = vsub.f32 %v467, %v635
      %v649 = vsub.f32 %v472, %v635
      %v650 = vsub.f32 %v477, %v635
      %v651 = vsub.f32 %v482, %v635
      %v652 = vsub.f32 %v487, %v635
      %v653 = vsub.f32 %v492, %v635
      %v654 = vsub.f32 %v497, %v635
      %v655 = vsub.f32 %v502, %v635
      %v656 = vsub.f32 %v507, %v635
      %v657 = vsub.f32 %v512, %v635
      %v658 = vsub.f32 %v517, %v635
      %v659 = vsub.f32 %v522, %v635
      %v660 = vsub.f32 %v527, %v635
      %v661 = vsub.f32 %v532, %v635
      %v662 = vsub.f32 %v537, %v635
      %v663 = vsub.f32 %v542, %v635
      %v664 = vsub.f32 %v547, %v635
      %v665 = vsub.f32 %v552, %v635
      %v666 = vsub.f32 %v557, %v635
      %v667 = vsub.f32 %v562, %v635
      %v668 = vmul.f32 %v636, %v636
      %v669 = vmul.f32 %v637, %v637
      %v670 = vmul.f32 %v638, %v638
      %v671 = vmul.f32 %v639, %v639
      %v672 = vmul.f32 %v640, %v640
      %v673 = vmul.f32 %v641, %v641
      %v674 = vmul.f32 %v642, %v642
      %v675 = vmul.f32 %v643, %v643
      %v676 = vmul.f32 %v644, %v644
      %v677 = vmul.f32 %v645, %v645
      %v678 = vmul.f32 %v646, %v646
      %v679 = vmul.f32 %v647, %v647
      %v680 = vmul.f32 %v648, %v648
      %v681 = vmul.f32 %v649, %v649
      %v682 = vmul.f32 %v650, %v650
      %v683 = vmul.f32 %v651, %v651
      %v684 = vmul.f32 %v652, %v652
      %v685 = vmul.f32 %v653, %v653
      %v686 = vmul.f32 %v654, %v654
      %v687 = vmul.f32 %v655, %v655
      %v688 = vmul.f32 %v656, %v656
      %v689 = vmul.f32 %v657, %v657
      %v690 = vmul.f32 %v658, %v658
      %v691 = vmul.f32 %v659, %v659
      %v692 = vmul.f32 %v660, %v660
      %v693 = vmul.f32 %v661, %v661
      %v694 = vmul.f32 %v662, %v662
      %v695 = vmul.f32 %v663, %v663
      %v696 = vmul.f32 %v664, %v664
      %v697 = vmul.f32 %v665, %v665
      %v698 = vmul.f32 %v666, %v666
      %v699 = vmul.f32 %v667, %v667
      %v700 = vadd.f32 %v668, %v669
      %v701 = vadd.f32 %v700, %v670
      %v702 = vadd.f32 %v701, %v671
      %v703 = vadd.f32 %v702, %v672
      %v704 = vadd.f32 %v703, %v673
      %v705 = vadd.f32 %v704, %v674
      %v706 = vadd.f32 %v705, %v675
      %v707 = vadd.f32 %v706, %v676
      %v708 = vadd.f32 %v707, %v677
      %v709 = vadd.f32 %v708, %v678
      %v710 = vadd.f32 %v709, %v679
      %v711 = vadd.f32 %v710, %v680
      %v712 = vadd.f32 %v711, %v681
      %v713 = vadd.f32 %v712, %v682
      %v714 = vadd.f32 %v713, %v683
      %v715 = vadd.f32 %v714, %v684
      %v716 = vadd.f32 %v715, %v685
      %v717 = vadd.f32 %v716, %v686
      %v718 = vadd.f32 %v717, %v687
      %v719 = vadd.f32 %v718, %v688
      %v720 = vadd.f32 %v719, %v689
      %v721 = vadd.f32 %v720, %v690
      %v722 = vadd.f32 %v721, %v691
      %v723 = vadd.f32 %v722, %v692
      %v724 = vadd.f32 %v723, %v693
      %v725 = vadd.f32 %v724, %v694
      %v726 = vadd.f32 %v725, %v695
      %v727 = vadd.f32 %v726, %v696
      %v728 = vadd.f32 %v727, %v697
      %v729 = vadd.f32 %v728, %v698
      %v730 = vadd.f32 %v729, %v699
      %v731 = vrot.slane %v730, 4
      %v732 = vadd.f32 %v730, %v731
      %v733 = vrot.slane %v732, 2
      %v734 = vadd.f32 %v732, %v733
      %v735 = vrot.slane %v734, 1
      %v736 = vadd.f32 %v734, %v735
      %s737 = smul.u32 %s16, 256
      %s738 = scvt.s32.f32 %s737
      %s739 = sadd.f32 %s738, 256.0
      %v740 = vld [vmem:[%s3] sm:$0x1]
      %v741 = vsub.f32 %v635, %v740
      %v742 = vstv %s739
      %v743 = vrcp.pop %v742
      %s744 = vtos %v743
      %s745 = smul.f32 256.0, %s744
      %v746 = vstv %s745
      %v747 = vmul.f32 %v741, %v746
      %v748 = vadd.f32 %v740, %v747
      %749 = vst [vmem:[%s3] sm:$0x1] %v748
      %v750 = vld [vmem:[%s4] sm:$0x1]
      %v751 = vadd.f32 %v750, %v736
      %v752 = vmul.f32 %v741, %v741
      %s753 = smul.f32 %s738, %s745
      %v754 = vstv %s753
      %v755 = vmul.f32 %v752, %v754
      %v756 = vadd.f32 %v751, %v755
      %757 = vst [vmem:[%s4] sm:$0x1] %v756
      %p758 = scmp.eq.s32.totalorder %s16, 1
      // Predicated region
      $region33: #{double_conv.4} parent=27 // pred_check
        %p759 = pneg %p758
      $region34: #{double_conv.4} parent=27 // pred_check_branch
        %761 = sbr.rel (%p759) target = $region36
      $region35: #{double_conv.4} parent=27 // pred_region
        %v762 = vld [vmem:[%s4] sm:$0x1]
        %v763 = vstv %s739
        %v764 = vrcp.pop %v763
        %v765 = vmul.f32 %v762, %v764
        %766 = vst [vmem:[%s4] sm:$0x1] %v765
      $region36: #{double_conv.4} parent=27 // pred_fallthru
        _
      %s767 = smul.u32 32, %s16
      %p768 = scmp.lt.s32.totalorder %s767, 63
      %s769 = scalar_select %p768, %s767, 63
      %s770 = smul.addr %s769, 8
      %s771 = scalar_lea.vmem %s2, %s770
      // Predicated region
      $region37: #{double_conv.4} parent=27 // pred_check
        %p772 = pneg %p81
      $region38: #{double_conv.4} parent=27 // pred_check_branch
        %774 = sbr.rel (%p772) target = $region40
      $region39: #{double_conv.4} parent=27 // pred_region
        %s775 = smul.u32 32, %s16
      $region40: #{double_conv.4} parent=27 // pred_fallthru
        _
      // Predicated region
      $region41: #{double_conv.4} parent=27 // pred_check
        %p776 = pneg %p102
      $region42: #{double_conv.4} parent=27 // pred_check_branch
        %778 = sbr.rel (%p776) target = $region44
      $region43: #{double_conv.4} parent=27 // pred_region
        _
      $region44: #{double_conv.4} parent=27 // pred_fallthru
        _
      // Predicated region
      $region45: #{double_conv.4} parent=27 // pred_check
        %p779 = pneg %p123
      $region46: #{double_conv.4} parent=27 // pred_check_branch
        %781 = sbr.rel (%p779) target = $region48
      $region47: #{double_conv.4} parent=27 // pred_region
        _
      $region48: #{double_conv.4} parent=27 // pred_fallthru
        _
      // Predicated region
      $region49: #{double_conv.4} parent=27 // pred_check
        %p782 = pneg %p102
      $region50: #{double_conv.4} parent=27 // pred_check_branch
        %784 = sbr.rel (%p782) target = $region52
      $region51: #{double_conv.4} parent=27 // pred_region
        _
      $region52: #{double_conv.4} parent=27 // pred_fallthru
        _
      // Predicated region
      $region53: #{double_conv.4} parent=27 // pred_check
        %p785 = pneg %p123
      $region54: #{double_conv.4} parent=27 // pred_check_branch
        %787 = sbr.rel (%p785) target = $region56
      $region55: #{double_conv.4} parent=27 // pred_region
        _
      $region56: #{double_conv.4} parent=27 // pred_fallthru
        _
    $region28: #{double_conv.4} parent=5 // pred_fallthru
      _
    %p788 = scmp.le.s32.totalorder 2, %s11
    // Predicated region
    $region57: #{double_conv.4} parent=5 // pred_check
      %p789 = pneg %p788
    $region58: #{double_conv.4} parent=5 // pred_check_branch
      %791 = sbr.rel (%p789) target = $region60
    $region59: #{double_conv.4} parent=5 // pred_region
      %s792 = ssub.s32 %s11, 2
      // Predicated region
      $region61: #{double_conv.4} parent=59 // pred_check
        %p793 = pneg %p87
      $region62: #{double_conv.4} parent=59 // pred_check_branch
        %795 = sbr.rel (%p793) target = $region64
      $region63: #{double_conv.4} parent=59 // pred_region
        %s796 = smul.u32 32, %s17
        %p797 = scmp.lt.s32.totalorder %s796, 63
        %s798 = scalar_select %p797, %s796, 63
        %s799 = smul.addr %s798, 8
        %s800 = scalar_lea.vmem %s2, %s799
      $region64: #{double_conv.4} parent=59 // pred_fallthru
        _
    $region60: #{double_conv.4} parent=5 // pred_fallthru
      _
  $region6: #{double_conv.4} parent=0 // loop_footer
    %s15 = sadd.s32 1, %s11
  $region7: #{double_conv.4} parent=0 // loop_footer_branch
    %10 = sbr.rel target = $region3
  $region8: #{double_conv.4} parent=0 // loop_exit
    _

// kernel: double_conv.6
$region0: #{double_conv.6}
  #allocation0 [shape = 'u32[]', space=smem, size = 0x4, offset = 0x4, fixed_abs, tag = 'smem constant byte address 0x4 - core index']
  #allocation1 [shape = 'u32[144,128]{1,0:T(1,128)}', space=vmem, size = 0x12000, scoped, tag = 'internal scratch']
  %s0 = inlined_call_operand.vmem [shape: f32[512,72], index: 0, kind: input, shape index: {}]
  %s1 = inlined_call_operand.vmem [shape: f32[72,128], index: 1, kind: input, shape index: {}]
  %s2 = inlined_call_operand.vmem [shape: f32[512,128], index: 2, kind: output, shape index: {0}]
  %s3 = inlined_call_operand.vmem [shape: f32[1,128], index: 3, kind: output, shape index: {1}]
  %s4 = inlined_call_operand.vmem [shape: f32[1,128], index: 4, kind: output, shape index: {2}]
  %5 = xla_tuple %s2, %s3, %s4
  %s6 = sld [smem:[#allocation0]]
  $region65: #{double_conv.6} parent=0
    _
  %s8 = ssub.s32 1, %s6
  %s9 = scalar_select 0, %s8, %s6
  loop: start=0, step=1, limit=4
  $region2: #{double_conv.6} parent=0 // loop_pre_header
    _
  $region3: #{double_conv.6} parent=0 // loop_header
    %s11 = sphi 0, %s15
    %p12 = scmp.ge.s32.totalorder %s11, 4
    %s21 = sphi 0, %s23
    %s24 = sphi 0, %s21
    %s25 = sphi 0, %s24
    %s41 = sphi 0, %s25
    %s45 = sphi 0, %s45
    %s47 = sphi 0, %s45
    %s48 = sphi 0, %s47
    %s62 = sphi 0, %s48
    %s68 = sphi 0, %s70
    %s71 = sphi 0, %s68
    %s72 = sphi 0, %s71
    %s88 = sphi 0, %s72
    %s92 = sphi 0, %s92
    %s94 = sphi 0, %s92
    %s95 = sphi 0, %s94
    %s109 = sphi 0, %s95
    %s113 = sphi 0, %s113
    %s115 = sphi 0, %s113
    %s116 = sphi 0, %s115
    %s130 = sphi 0, %s116
  $region4: #{double_conv.6} parent=0 // loop_header_branch
    %14 = sbr.rel (%p12) target = $region8
  $region5: #{double_conv.6} parent=0 // loop_body
    %s16 = ssub.s32 %s11, 1
    %s17 = ssub.s32 %s11, 2
    %s18 = sadd.s32 %s11, 1
    %s19 = ssub.s32 %s11, %s18
    %p20 = scmp.eq.s32.totalorder %s19, 0
    %s22 = sadd.s32 %s21, 1
    %s23 = scalar_select %p20, %s21, %s22
    %p26 = pneg %p20
    %p27 = scmp.eq.s32.totalorder %s11, 1
    %p28 = por %p26, %p27
    %p29 = scmp.ne.s32.totalorder %s21, %s24
    %p30 = scmp.eq.s32.totalorder %s11, 0
    %p31 = por %p29, %p30
    %p32 = scmp.ne.s32.totalorder %s21, %s24
    %p33 = scmp.eq.s32.totalorder %s16, 1
    %p34 = por %p32, %p33
    %p35 = scmp.ne.s32.totalorder %s24, %s25
    %p36 = scmp.eq.s32.totalorder %s16, 0
    %p37 = por %p35, %p36
    %p38 = scmp.ne.s32.totalorder %s24, %s25
    %p39 = scmp.eq.s32.totalorder %s17, 1
    %p40 = por %p38, %p39
    %p42 = scmp.ne.s32.totalorder %s25, %s41
    %p43 = scmp.eq.s32.totalorder %s17, 0
    %p44 = por %p42, %p43
    %s46 = sadd.s32 %s45, 1
    %p49 = scmp.eq.s32.totalorder %s11, 1
    %p50 = scmp.ne.s32.totalorder %s45, %s47
    %p51 = scmp.eq.s32.totalorder %s11, 0
    %p52 = por %p50, %p51
    %p53 = scmp.ne.s32.totalorder %s45, %s47
    %p54 = scmp.eq.s32.totalorder %s16, 1
    %p55 = por %p53, %p54
    %p56 = scmp.ne.s32.totalorder %s47, %s48
    %p57 = scmp.eq.s32.totalorder %s16, 0
    %p58 = por %p56, %p57
    %p59 = scmp.ne.s32.totalorder %s47, %s48
    %p60 = scmp.eq.s32.totalorder %s17, 1
    %p61 = por %p59, %p60
    %p63 = scmp.ne.s32.totalorder %s48, %s62
    %p64 = scmp.eq.s32.totalorder %s17, 0
    %p65 = por %p63, %p64
    %s66 = ssub.s32 %s11, %s18
    %p67 = scmp.eq.s32.totalorder %s66, 0
    %s69 = sadd.s32 %s68, 1
    %s70 = scalar_select %p67, %s68, %s69
    %p73 = pneg %p67
    %p74 = scmp.eq.s32.totalorder %s11, 1
    %p75 = por %p73, %p74
    %p76 = scmp.ne.s32.totalorder %s68, %s71
    %p77 = scmp.eq.s32.totalorder %s11, 0
    %p78 = por %p76, %p77
    %p79 = scmp.ne.s32.totalorder %s68, %s71
    %p80 = scmp.eq.s32.totalorder %s16, 1
    %p81 = por %p79, %p80
    %p82 = scmp.ne.s32.totalorder %s71, %s72
    %p83 = scmp.eq.s32.totalorder %s16, 0
    %p84 = por %p82, %p83
    %p85 = scmp.ne.s32.totalorder %s71, %s72
    %p86 = scmp.eq.s32.totalorder %s17, 1
    %p87 = por %p85, %p86
    %p89 = scmp.ne.s32.totalorder %s72, %s88
    %p90 = scmp.eq.s32.totalorder %s17, 0
    %p91 = por %p89, %p90
    %s93 = sadd.s32 %s92, 1
    %p96 = scmp.eq.s32.totalorder %s11, 1
    %p97 = scmp.ne.s32.totalorder %s92, %s94
    %p98 = scmp.eq.s32.totalorder %s11, 0
    %p99 = por %p97, %p98
    %p100 = scmp.ne.s32.totalorder %s92, %s94
    %p101 = scmp.eq.s32.totalorder %s16, 1
    %p102 = por %p100, %p101
    %p103 = scmp.ne.s32.totalorder %s94, %s95
    %p104 = scmp.eq.s32.totalorder %s16, 0
    %p105 = por %p103, %p104
    %p106 = scmp.ne.s32.totalorder %s94, %s95
    %p107 = scmp.eq.s32.totalorder %s17, 1
    %p108 = por %p106, %p107
    %p110 = scmp.ne.s32.totalorder %s95, %s109
    %p111 = scmp.eq.s32.totalorder %s17, 0
    %p112 = por %p110, %p111
    %s114 = sadd.s32 %s113, 1
    %p117 = scmp.eq.s32.totalorder %s11, 1
    %p118 = scmp.ne.s32.totalorder %s113, %s115
    %p119 = scmp.eq.s32.totalorder %s11, 0
    %p120 = por %p118, %p119
    %p121 = scmp.ne.s32.totalorder %s113, %s115
    %p122 = scmp.eq.s32.totalorder %s16, 1
    %p123 = por %p121, %p122
    %p124 = scmp.ne.s32.totalorder %s115, %s116
    %p125 = scmp.eq.s32.totalorder %s16, 0
    %p126 = por %p124, %p125
    %p127 = scmp.ne.s32.totalorder %s115, %s116
    %p128 = scmp.eq.s32.totalorder %s17, 1
    %p129 = por %p127, %p128
    %p131 = scmp.ne.s32.totalorder %s116, %s130
    %p132 = scmp.eq.s32.totalorder %s17, 0
    %p133 = por %p131, %p132
    %p134 = scmp.le.s32.totalorder 1, %s11
    %p135 = scmp.lt.s32.totalorder %s11, 3
    %p136 = pnand %p134, %p135
    %p137 = pneg %p136
    // Predicated region
    $region9: #{double_conv.6} parent=5 // pred_check
      _
    $region10: #{double_conv.6} parent=5 // pred_check_branch
      %139 = sbr.rel (%p136) target = $region12
    $region11: #{double_conv.6} parent=5 // pred_region
      %s140 = ssub.s32 %s11, 1
      // Predicated region
      $region13: #{double_conv.6} parent=11 // pred_check
        %p141 = pneg %p58
      $region14: #{double_conv.6} parent=11 // pred_check_branch
        %143 = sbr.rel (%p141) target = $region16
      $region15: #{double_conv.6} parent=11 // pred_region
        _
      $region16: #{double_conv.6} parent=11 // pred_fallthru
        _
    $region12: #{double_conv.6} parent=5 // pred_fallthru
      _
    %p144 = scmp.lt.s32.totalorder %s11, 2
    // Predicated region
    $region17: #{double_conv.6} parent=5 // pred_check
      %p145 = pneg %p144
    $region18: #{double_conv.6} parent=5 // pred_check_branch
      %147 = sbr.rel (%p145) target = $region20
    $region19: #{double_conv.6} parent=5 // pred_region
      // Predicated region
      $region21: #{double_conv.6} parent=19 // pred_check
        %p148 = pneg %p31
      $region22: #{double_conv.6} parent=19 // pred_check_branch
        %150 = sbr.rel (%p148) target = $region24
      $region23: #{double_conv.6} parent=19 // pred_region
        %s151 = smul.u32 32, %s11
        %p152 = scmp.lt.s32.totalorder %s151, 63
        %s153 = scalar_select %p152, %s151, 63
        %s154 = smul.addr %s153, 8
        %s155 = scalar_lea.vmem %s0, %s154
        %s156 = smul.u32 32, %s11
      $region24: #{double_conv.6} parent=19 // pred_fallthru
        _
    $region20: #{double_conv.6} parent=5 // pred_fallthru
      _
    %p157 = scmp.le.s32.totalorder 1, %s11
    %p158 = scmp.lt.s32.totalorder %s11, 3
    %p159 = pnand %p157, %p158
    %p160 = pneg %p159
    // Predicated region
    $region25: #{double_conv.6} parent=5 // pred_check
      _
    $region26: #{double_conv.6} parent=5 // pred_check_branch
      %162 = sbr.rel (%p159) target = $region28
    $region27: #{double_conv.6} parent=5 // pred_region
      %s163 = ssub.s32 %s11, 1
      %s164 = smul.u32 32, %s16
      %p165 = scmp.lt.s32.totalorder %s164, 63
      %s166 = scalar_select %p165, %s164, 63
      %s167 = smul.addr %s166, 8
      %s168 = scalar_lea.vmem %s0, %s167
      %p169 = pneg %p37
      %p170 = pneg %p34
      %p171 = pneg %p58
      %p172 = pneg %p55
      %p173 = pneg %p84
      %p174 = pneg %p81
      %s175 = smul.u32 32, %s16
      %p176 = scmp.lt.s32.totalorder %s175, 63
      %s177 = scalar_select %p176, %s175, 63
      %s178 = smul.addr %s177, 8
      %s179 = scalar_lea.vmem %s2, %s178
      %p180 = pneg %p105
      %p181 = pneg %p102
      %p182 = pneg %p126
      %p183 = pneg %p123
      %s184 = smul.u32 32, %s16
      %p185 = scmp.lt.s32.totalorder %s184, 63
      %s186 = scalar_select %p185, %s184, 63
      %s187 = smul.addr %s186, 8
      %s188 = scalar_lea.vmem %s0, %s187
      %s189 = smul.u32 32, %s16
      %s190 = smul.u32 32, %s16
      %p191 = scmp.lt.s32.totalorder %s190, 63
      %s192 = scalar_select %p191, %s190, 63
      %s193 = smul.addr %s192, 8
      %s194 = scalar_lea.vmem %s2, %s193
      %s195 = smul.u32 32, %s16
      %p196 = scmp.eq.s32.totalorder %s16, 0
      // Predicated region
      $region29: #{double_conv.6} parent=27 // pred_check
        %p197 = pneg %p196
      $region30: #{double_conv.6} parent=27 // pred_check_branch
        %199 = sbr.rel (%p197) target = $region32
      $region31: #{double_conv.6} parent=27 // pred_region
        %200 = vst [vmem:[%s3] sm:$0x1] 0.0
        %201 = vst [vmem:[%s4] sm:$0x1] 0.0
      $region32: #{double_conv.6} parent=27 // pred_fallthru
        _
      %v202 = vld [vmem:[%s188] sm:$0xff]
      %v203 = vld [vmem:[%s188 + $0x8] sm:$0xff]
      %v204 = vld [vmem:[%s188 + $0x10] sm:$0xff]
      %v205 = vld [vmem:[%s188 + $0x18] sm:$0xff]
      %v206 = vld [vmem:[%s188 + $0x20] sm:$0xff]
      %v207 = vld [vmem:[%s188 + $0x28] sm:$0xff]
      %v208 = vld [vmem:[%s188 + $0x30] sm:$0xff]
      %v209 = vld [vmem:[%s188 + $0x38] sm:$0xff]
      %v210 = vld [vmem:[%s188 + $0x40] sm:$0xff]
      %v211 = vld [vmem:[%s188 + $0x48] sm:$0xff]
      %v212 = vld [vmem:[%s188 + $0x50] sm:$0xff]
      %v213 = vld [vmem:[%s188 + $0x58] sm:$0xff]
      %v214 = vld [vmem:[%s188 + $0x60] sm:$0xff]
      %v215 = vld [vmem:[%s188 + $0x68] sm:$0xff]
      %v216 = vld [vmem:[%s188 + $0x70] sm:$0xff]
      %v217 = vld [vmem:[%s188 + $0x78] sm:$0xff]
      %v218 = vld [vmem:[%s188 + $0x80] sm:$0xff]
      %v219 = vld [vmem:[%s188 + $0x88] sm:$0xff]
      %v220 = vld [vmem:[%s188 + $0x90] sm:$0xff]
      %v221 = vld [vmem:[%s188 + $0x98] sm:$0xff]
      %v222 = vld [vmem:[%s188 + $0xa0] sm:$0xff]
      %v223 = vld [vmem:[%s188 + $0xa8] sm:$0xff]
      %v224 = vld [vmem:[%s188 + $0xb0] sm:$0xff]
      %v225 = vld [vmem:[%s188 + $0xb8] sm:$0xff]
      %v226 = vld [vmem:[%s188 + $0xc0] sm:$0xff]
      %v227 = vld [vmem:[%s188 + $0xc8] sm:$0xff]
      %v228 = vld [vmem:[%s188 + $0xd0] sm:$0xff]
      %v229 = vld [vmem:[%s188 + $0xd8] sm:$0xff]
      %v230 = vld [vmem:[%s188 + $0xe0] sm:$0xff]
      %v231 = vld [vmem:[%s188 + $0xe8] sm:$0xff]
      %v232 = vld [vmem:[%s188 + $0xf0] sm:$0xff]
      %v233 = vld [vmem:[%s188 + $0xf8] sm:$0xff]
      %v234 = vld [vmem:[%s1] sm:$0xff]
      %v235 = vld [vmem:[%s1 + $0x8] sm:$0xff]
      %v236 = vld [vmem:[%s1 + $0x10] sm:$0xff]
      %v237 = vld [vmem:[%s1 + $0x18] sm:$0xff]
      %v238 = vld [vmem:[%s1 + $0x20] sm:$0xff]
      %v239 = vld [vmem:[%s1 + $0x28] sm:$0xff]
      %v240 = vld [vmem:[%s1 + $0x30] sm:$0xff]
      %v241 = vld [vmem:[%s1 + $0x38] sm:$0xff]
      %v242 = vld [vmem:[%s1 + $0x40] sm:$0xff]
      %vm243 = vcmask 588800
      %v245 = vsel %vm243, %v202, 0
      %v248 = vsel %vm243, %v203, 0
      %v251 = vsel %vm243, %v204, 0
      %v254 = vsel %vm243, %v205, 0
      %v257 = vsel %vm243, %v206, 0
      %v260 = vsel %vm243, %v207, 0
      %v263 = vsel %vm243, %v208, 0
      %v266 = vsel %vm243, %v209, 0
      %v269 = vsel %vm243, %v210, 0
      %v272 = vsel %vm243, %v211, 0
      %v275 = vsel %vm243, %v212, 0
      %v278 = vsel %vm243, %v213, 0
      %v281 = vsel %vm243, %v214, 0
      %v284 = vsel %vm243, %v215, 0
      %v287 = vsel %vm243, %v216, 0
      %v290 = vsel %vm243, %v217, 0
      %v293 = vsel %vm243, %v218, 0
      %v296 = vsel %vm243, %v219, 0
      %v299 = vsel %vm243, %v220, 0
      %v302 = vsel %vm243, %v221, 0
      %v305 = vsel %vm243, %v222, 0
      %v308 = vsel %vm243, %v223, 0
      %v311 = vsel %vm243, %v224, 0
      %v314 = vsel %vm243, %v225, 0
      %v317 = vsel %vm243, %v226, 0
      %v320 = vsel %vm243, %v227, 0
      %v323 = vsel %vm243, %v228, 0
      %v326 = vsel %vm243, %v229, 0
      %v329 = vsel %vm243, %v230, 0
      %v332 = vsel %vm243, %v231, 0
      %v335 = vsel %vm243, %v232, 0
      %v338 = vsel %vm243, %v233, 0
      %340 = vmatprep.subr.mxu0 0.0
      %341 = vmatpush1.msra.mxu0 %v234
      %342 = vmatprep.subr.mxu0 0.0
      %343 = vmatpush1.msra.mxu0 %v235
      %344 = vmatprep.subr.mxu0 0.0
      %345 = vmatpush1.msra.mxu0 %v236
      %346 = vmatprep.subr.mxu0 0.0
      %347 = vmatpush1.msra.mxu0 %v237
      %348 = vmatprep.subr.mxu0 0.0
      %349 = vmatpush1.msra.mxu0 %v238
      %350 = vmatprep.subr.mxu0 0.0
      %351 = vmatpush1.msra.mxu0 %v239
      %352 = vmatprep.subr.mxu0 0.0
      %353 = vmatpush1.msra.mxu0 %v240
      %354 = vmatprep.subr.mxu0 0.0
      %355 = vmatpush1.msra.mxu0 %v241
      %356 = vmatprep.subr.mxu0 0.0
      %357 = vmatpush1.msra.mxu0 %v242
      %358 = vmatprep.subr.mxu0 0.0
      %359 = vmatpush1.msra.mxu0 0.0
      %360 = vmatprep.subr.mxu0 0.0
      %361 = vmatpush1.msra.mxu0 0.0
      %362 = vmatprep.subr.mxu0 0.0
      %363 = vmatpush1.msra.mxu0 0.0
      %364 = vmatprep.subr.mxu0 0.0
      %365 = vmatpush1.msra.mxu0 0.0
      %366 = vmatprep.subr.mxu0 0.0
      %367 = vmatpush1.msra.mxu0 0.0
      %368 = vmatprep.subr.mxu0 0.0
      %369 = vmatpush1.msra.mxu0 0.0
      %370 = vmatprep.subr.mxu0 0.0
      %371 = vmatpush1.msra.mxu0 0.0
      %372 = vmatprep.subr.mxu0 0.0
      %373 = vmatpush1.msra.mxu0 0.0
      %374 = vmatprep.subr.mxu0 0.0
      %375 = vmatpush1.msra.mxu0 0.0
      %376 = vmatprep.subr.mxu0 0.0
      %377 = vmatpush1.msra.mxu0 0.0
      %378 = vmatprep.subr.mxu0 0.0
      %379 = vmatpush1.msra.mxu0 0.0
      %380 = vmatprep.subr.mxu0 0.0
      %381 = vmatpush1.msra.mxu0 0.0
      %382 = vmatprep.subr.mxu0 0.0
      %383 = vmatpush1.msra.mxu0 0.0
      %384 = vmatprep.subr.mxu0 0.0
      %385 = vmatpush1.msra.mxu0 0.0
      %386 = vmatprep.subr.mxu0 0.0
      %387 = vmatpush1.msra.mxu0 0.0
      %388 = vmatprep.subr.mxu0 0.0
      %389 = vmatpush1.msra.mxu0 0.0
      %390 = vmatprep.subr.mxu0 0.0
      %391 = vmatpush1.msra.mxu0 0.0
      %392 = vmatprep.subr.mxu0 0.0
      %393 = vmatpush1.msra.mxu0 0.0
      %394 = vmatprep.subr.mxu0 0.0
      %395 = vmatpush1.msra.mxu0 0.0
      %396 = vmatprep.subr.mxu0 0.0
      %397 = vmatpush1.msra.mxu0 0.0
      %398 = vmatprep.subr.mxu0 0.0
      %399 = vmatpush1.msra.mxu0 0.0
      %400 = vmatprep.subr.mxu0 0.0
      %401 = vmatpush1.msra.mxu0 0.0
      %402 = vmatprep.subr.mxu0 0.0
      %403 = vmatpush1.msra.mxu0 0.0
      %404 = vmatprep.mubr.f32.mxu0 0.0
      %405 = vmatmul.mubr.f32.gmra.mrb[0].mxu0 %v245
      %v406 = vpop.f32.mrb[0].mxu0
      %v407 = vadd.f32 0.0, %v406
      %v408 = vpop.f32.mrb[0].mxu0
      %409 = vmatprep.mubr.f32.mxu0 0.0
      %410 = vmatmul.mubr.f32.gmra.mrb[0].mxu0 %v248
      %v411 = vpop.f32.mrb[0].mxu0
      %v412 = vadd.f32 0.0, %v411
      %v413 = vpop.f32.mrb[0].mxu0
      %414 = vmatprep.mubr.f32.mxu0 0.0
      %415 = vmatmul.mubr.f32.gmra.mrb[0].mxu0 %v251
      %v416 = vpop.f32.mrb[0].mxu0
      %v417 = vadd.f32 0.0, %v416
      %v418 = vpop.f32.mrb[0].mxu0
      %419 = vmatprep.mubr.f32.mxu0 0.0
      %420 = vmatmul.mubr.f32.gmra.mrb[0].mxu0 %v254
      %v421 = vpop.f32.mrb[0].mxu0
      %v422 = vadd.f32 0.0, %v421
      %v423 = vpop.f32.mrb[0].mxu0
      %424 = vmatprep.mubr.f32.mxu0 0.0
      %425 = vmatmul.mubr.f32.gmra.mrb[0].mxu0 %v257
      %v426 = vpop.f32.mrb[0].mxu0
      %v427 = vadd.f32 0.0, %v426
      %v428 = vpop.f32.mrb[0].mxu0
      %429 = vmatprep.mubr.f32.mxu0 0.0
      %430 = vmatmul.mubr.f32.gmra.mrb[0].mxu0 %v260
      %v431 = vpop.f32.mrb[0].mxu0
      %v432 = vadd.f32 0.0, %v431
      %v433 = vpop.f32.mrb[0].mxu0
      %434 = vmatprep.mubr.f32.mxu0 0.0
      %435 = vmatmul.mubr.f32.gmra.mrb[0].mxu0 %v263
      %v436 = vpop.f32.mrb[0].mxu0
      %v437 = vadd.f32 0.0, %v436
      %v438 = vpop.f32.mrb[0].mxu0
      %439 = vmatprep.mubr.f32.mxu0 0.0
      %440 = vmatmul.mubr.f32.gmra.mrb[0].mxu0 %v266
      %v441 = vpop.f32.mrb[0].mxu0
      %v442 = vadd.f32 0.0, %v441
      %v443 = vpop.f32.mrb[0].mxu0
      %444 = vmatprep.mubr.f32.mxu0 0.0
      %445 = vmatmul.mubr.f32.gmra.mrb[0].mxu0 %v269
      %v446 = vpop.f32.mrb[0].mxu0
      %v447 = vadd.f32 0.0, %v446
      %v448 = vpop.f32.mrb[0].mxu0
      %449 = vmatprep.mubr.f32.mxu0 0.0
      %450 = vmatmul.mubr.f32.gmra.mrb[0].mxu0 %v272
      %v451 = vpop.f32.mrb[0].mxu0
      %v452 = vadd.f32 0.0, %v451
      %v453 = vpop.f32.mrb[0].mxu0
      %454 = vmatprep.mubr.f32.mxu0 0.0
      %455 = vmatmul.mubr.f32.gmra.mrb[0].mxu0 %v275
      %v456 = vpop.f32.mrb[0].mxu0
      %v457 = vadd.f32 0.0, %v456
      %v458 = vpop.f32.mrb[0].mxu0
      %459 = vmatprep.mubr.f32.mxu0 0.0
      %460 = vmatmul.mubr.f32.gmra.mrb[0].mxu0 %v278
      %v461 = vpop.f32.mrb[0].mxu0
      %v462 = vadd.f32 0.0, %v461
      %v463 = vpop.f32.mrb[0].mxu0
      %464 = vmatprep.mubr.f32.mxu0 0.0
      %465 = vmatmul.mubr.f32.gmra.mrb[0].mxu0 %v281
      %v466 = vpop.f32.mrb[0].mxu0
      %v467 = vadd.f32 0.0, %v466
      %v468 = vpop.f32.mrb[0].mxu0
      %469 = vmatprep.mubr.f32.mxu0 0.0
      %470 = vmatmul.mubr.f32.gmra.mrb[0].mxu0 %v284
      %v471 = vpop.f32.mrb[0].mxu0
      %v472 = vadd.f32 0.0, %v471
      %v473 = vpop.f32.mrb[0].mxu0
      %474 = vmatprep.mubr.f32.mxu0 0.0
      %475 = vmatmul.mubr.f32.gmra.mrb[0].mxu0 %v287
      %v476 = vpop.f32.mrb[0].mxu0
      %v477 = vadd.f32 0.0, %v476
      %v478 = vpop.f32.mrb[0].mxu0
      %479 = vmatprep.mubr.f32.mxu0 0.0
      %480 = vmatmul.mubr.f32.gmra.mrb[0].mxu0 %v290
      %v481 = vpop.f32.mrb[0].mxu0
      %v482 = vadd.f32 0.0, %v481
      %v483 = vpop.f32.mrb[0].mxu0
      %484 = vmatprep.mubr.f32.mxu0 0.0
      %485 = vmatmul.mubr.f32.gmra.mrb[0].mxu0 %v293
      %v486 = vpop.f32.mrb[0].mxu0
      %v487 = vadd.f32 0.0, %v486
      %v488 = vpop.f32.mrb[0].mxu0
      %489 = vmatprep.mubr.f32.mxu0 0.0
      %490 = vmatmul.mubr.f32.gmra.mrb[0].mxu0 %v296
      %v491 = vpop.f32.mrb[0].mxu0
      %v492 = vadd.f32 0.0, %v491
      %v493 = vpop.f32.mrb[0].mxu0
      %494 = vmatprep.mubr.f32.mxu0 0.0
      %495 = vmatmul.mubr.f32.gmra.mrb[0].mxu0 %v299
      %v496 = vpop.f32.mrb[0].mxu0
      %v497 = vadd.f32 0.0, %v496
      %v498 = vpop.f32.mrb[0].mxu0
      %499 = vmatprep.mubr.f32.mxu0 0.0
      %500 = vmatmul.mubr.f32.gmra.mrb[0].mxu0 %v302
      %v501 = vpop.f32.mrb[0].mxu0
      %v502 = vadd.f32 0.0, %v501
      %v503 = vpop.f32.mrb[0].mxu0
      %504 = vmatprep.mubr.f32.mxu0 0.0
      %505 = vmatmul.mubr.f32.gmra.mrb[0].mxu0 %v305
      %v506 = vpop.f32.mrb[0].mxu0
      %v507 = vadd.f32 0.0, %v506
      %v508 = vpop.f32.mrb[0].mxu0
      %509 = vmatprep.mubr.f32.mxu0 0.0
      %510 = vmatmul.mubr.f32.gmra.mrb[0].mxu0 %v308
      %v511 = vpop.f32.mrb[0].mxu0
      %v512 = vadd.f32 0.0, %v511
      %v513 = vpop.f32.mrb[0].mxu0
      %514 = vmatprep.mubr.f32.mxu0 0.0
      %515 = vmatmul.mubr.f32.gmra.mrb[0].mxu0 %v311
      %v516 = vpop.f32.mrb[0].mxu0
      %v517 = vadd.f32 0.0, %v516
      %v518 = vpop.f32.mrb[0].mxu0
      %519 = vmatprep.mubr.f32.mxu0 0.0
      %520 = vmatmul.mubr.f32.gmra.mrb[0].mxu0 %v314
      %v521 = vpop.f32.mrb[0].mxu0
      %v522 = vadd.f32 0.0, %v521
      %v523 = vpop.f32.mrb[0].mxu0
      %524 = vmatprep.mubr.f32.mxu0 0.0
      %525 = vmatmul.mubr.f32.gmra.mrb[0].mxu0 %v317
      %v526 = vpop.f32.mrb[0].mxu0
      %v527 = vadd.f32 0.0, %v526
      %v528 = vpop.f32.mrb[0].mxu0
      %529 = vmatprep.mubr.f32.mxu0 0.0
      %530 = vmatmul.mubr.f32.gmra.mrb[0].mxu0 %v320
      %v531 = vpop.f32.mrb[0].mxu0
      %v532 = vadd.f32 0.0, %v531
      %v533 = vpop.f32.mrb[0].mxu0
      %534 = vmatprep.mubr.f32.mxu0 0.0
      %535 = vmatmul.mubr.f32.gmra.mrb[0].mxu0 %v323
      %v536 = vpop.f32.mrb[0].mxu0
      %v537 = vadd.f32 0.0, %v536
      %v538 = vpop.f32.mrb[0].mxu0
      %539 = vmatprep.mubr.f32.mxu0 0.0
      %540 = vmatmul.mubr.f32.gmra.mrb[0].mxu0 %v326
      %v541 = vpop.f32.mrb[0].mxu0
      %v542 = vadd.f32 0.0, %v541
      %v543 = vpop.f32.mrb[0].mxu0
      %544 = vmatprep.mubr.f32.mxu0 0.0
      %545 = vmatmul.mubr.f32.gmra.mrb[0].mxu0 %v329
      %v546 = vpop.f32.mrb[0].mxu0
      %v547 = vadd.f32 0.0, %v546
      %v548 = vpop.f32.mrb[0].mxu0
      %549 = vmatprep.mubr.f32.mxu0 0.0
      %550 = vmatmul.mubr.f32.gmra.mrb[0].mxu0 %v332
      %v551 = vpop.f32.mrb[0].mxu0
      %v552 = vadd.f32 0.0, %v551
      %v553 = vpop.f32.mrb[0].mxu0
      %554 = vmatprep.mubr.f32.mxu0 0.0
      %555 = vmatmul.mubr.f32.gmra.mrb[0].mxu0 %v335
      %v556 = vpop.f32.mrb[0].mxu0
      %v557 = vadd.f32 0.0, %v556
      %v558 = vpop.f32.mrb[0].mxu0
      %559 = vmatprep.mubr.f32.mxu0 0.0
      %560 = vmatmul.mubr.f32.gmra.mrb[0].mxu0 %v338
      %v561 = vpop.f32.mrb[0].mxu0
      %v562 = vadd.f32 0.0, %v561
      %v563 = vpop.f32.mrb[0].mxu0
      %564 = vdwg.mxu0
      %565 = vst [vmem:[%s194] sm:$0xff] %v407
      %566 = vst [vmem:[%s194 + $0x8] sm:$0xff] %v412
      %567 = vst [vmem:[%s194 + $0x10] sm:$0xff] %v417
      %568 = vst [vmem:[%s194 + $0x18] sm:$0xff] %v422
      %569 = vst [vmem:[%s194 + $0x20] sm:$0xff] %v427
      %570 = vst [vmem:[%s194 + $0x28] sm:$0xff] %v432
      %571 = vst [vmem:[%s194 + $0x30] sm:$0xff] %v437
      %572 = vst [vmem:[%s194 + $0x38] sm:$0xff] %v442
      %573 = vst [vmem:[%s194 + $0x40] sm:$0xff] %v447
      %574 = vst [vmem:[%s194 + $0x48] sm:$0xff] %v452
      %575 = vst [vmem:[%s194 + $0x50] sm:$0xff] %v457
      %576 = vst [vmem:[%s194 + $0x58] sm:$0xff] %v462
      %577 = vst [vmem:[%s194 + $0x60] sm:$0xff] %v467
      %578 = vst [vmem:[%s194 + $0x68] sm:$0xff] %v472
      %579 = vst [vmem:[%s194 + $0x70] sm:$0xff] %v477
      %580 = vst [vmem:[%s194 + $0x78] sm:$0xff] %v482
      %581 = vst [vmem:[%s194 + $0x80] sm:$0xff] %v487
      %582 = vst [vmem:[%s194 + $0x88] sm:$0xff] %v492
      %583 = vst [vmem:[%s194 + $0x90] sm:$0xff] %v497
      %584 = vst [vmem:[%s194 + $0x98] sm:$0xff] %v502
      %585 = vst [vmem:[%s194 + $0xa0] sm:$0xff] %v507
      %586 = vst [vmem:[%s194 + $0xa8] sm:$0xff] %v512
      %587 = vst [vmem:[%s194 + $0xb0] sm:$0xff] %v517
      %588 = vst [vmem:[%s194 + $0xb8] sm:$0xff] %v522
      %589 = vst [vmem:[%s194 + $0xc0] sm:$0xff] %v527
      %590 = vst [vmem:[%s194 + $0xc8] sm:$0xff] %v532
      %591 = vst [vmem:[%s194 + $0xd0] sm:$0xff] %v537
      %592 = vst [vmem:[%s194 + $0xd8] sm:$0xff] %v542
      %593 = vst [vmem:[%s194 + $0xe0] sm:$0xff] %v547
      %594 = vst [vmem:[%s194 + $0xe8] sm:$0xff] %v552
      %595 = vst [vmem:[%s194 + $0xf0] sm:$0xff] %v557
      %596 = vst [vmem:[%s194 + $0xf8] sm:$0xff] %v562
      %v597 = vadd.f32 %v407, %v412
      %v598 = vadd.f32 %v597, %v417
      %v599 = vadd.f32 %v598, %v422
      %v600 = vadd.f32 %v599, %v427
      %v601 = vadd.f32 %v600, %v432
      %v602 = vadd.f32 %v601, %v437
      %v603 = vadd.f32 %v602, %v442
      %v604 = vadd.f32 %v603, %v447
      %v605 = vadd.f32 %v604, %v452
      %v606 = vadd.f32 %v605, %v457
      %v607 = vadd.f32 %v606, %v462
      %v608 = vadd.f32 %v607, %v467
      %v609 = vadd.f32 %v608, %v472
      %v610 = vadd.f32 %v609, %v477
      %v611 = vadd.f32 %v610, %v482
      %v612 = vadd.f32 %v611, %v487
      %v613 = vadd.f32 %v612, %v492
      %v614 = vadd.f32 %v613, %v497
      %v615 = vadd.f32 %v614, %v502
      %v616 = vadd.f32 %v615, %v507
      %v617 = vadd.f32 %v616, %v512
      %v618 = vadd.f32 %v617, %v517
      %v619 = vadd.f32 %v618, %v522
      %v620 = vadd.f32 %v619, %v527
      %v621 = vadd.f32 %v620, %v532
      %v622 = vadd.f32 %v621, %v537
      %v623 = vadd.f32 %v622, %v542
      %v624 = vadd.f32 %v623, %v547
      %v625 = vadd.f32 %v624, %v552
      %v626 = vadd.f32 %v625, %v557
      %v627 = vadd.f32 %v626, %v562
      %v628 = vrot.slane %v627, 4
      %v629 = vadd.f32 %v627, %v628
      %v630 = vrot.slane %v629, 2
      %v631 = vadd.f32 %v629, %v630
      %v632 = vrot.slane %v631, 1
      %v633 = vadd.f32 %v631, %v632
      %v634 = vrcp.pop 256.0
      %v635 = vmul.f32 %v633, %v634
      %v636 = vsub.f32 %v407, %v635
      %v637 = vsub.f32 %v412, %v635
      %v638 = vsub.f32 %v417, %v635
      %v639 = vsub.f32 %v422, %v635
      %v640 = vsub.f32 %v427, %v635
      %v641 = vsub.f32 %v432, %v635
      %v642 = vsub.f32 %v437, %v635
      %v643 = vsub.f32 %v442, %v635
      %v644 = vsub.f32 %v447, %v635
      %v645 = vsub.f32 %v452, %v635
      %v646 = vsub.f32 %v457, %v635
      %v647 = vsub.f32 %v462, %v635
      %v648 = vsub.f32 %v467, %v635
      %v649 = vsub.f32 %v472, %v635
      %v650 = vsub.f32 %v477, %v635
      %v651 = vsub.f32 %v482, %v635
      %v652 = vsub.f32 %v487, %v635
      %v653 = vsub.f32 %v492, %v635
      %v654 = vsub.f32 %v497, %v635
      %v655 = vsub.f32 %v502, %v635
      %v656 = vsub.f32 %v507, %v635
      %v657 = vsub.f32 %v512, %v635
      %v658 = vsub.f32 %v517, %v635
      %v659 = vsub.f32 %v522, %v635
      %v660 = vsub.f32 %v527, %v635
      %v661 = vsub.f32 %v532, %v635
      %v662 = vsub.f32 %v537, %v635
      %v663 = vsub.f32 %v542, %v635
      %v664 = vsub.f32 %v547, %v635
      %v665 = vsub.f32 %v552, %v635
      %v666 = vsub.f32 %v557, %v635
      %v667 = vsub.f32 %v562, %v635
      %v668 = vmul.f32 %v636, %v636
      %v669 = vmul.f32 %v637, %v637
      %v670 = vmul.f32 %v638, %v638
      %v671 = vmul.f32 %v639, %v639
      %v672 = vmul.f32 %v640, %v640
      %v673 = vmul.f32 %v641, %v641
      %v674 = vmul.f32 %v642, %v642
      %v675 = vmul.f32 %v643, %v643
      %v676 = vmul.f32 %v644, %v644
      %v677 = vmul.f32 %v645, %v645
      %v678 = vmul.f32 %v646, %v646
      %v679 = vmul.f32 %v647, %v647
      %v680 = vmul.f32 %v648, %v648
      %v681 = vmul.f32 %v649, %v649
      %v682 = vmul.f32 %v650, %v650
      %v683 = vmul.f32 %v651, %v651
      %v684 = vmul.f32 %v652, %v652
      %v685 = vmul.f32 %v653, %v653
      %v686 = vmul.f32 %v654, %v654
      %v687 = vmul.f32 %v655, %v655
      %v688 = vmul.f32 %v656, %v656
      %v689 = vmul.f32 %v657, %v657
      %v690 = vmul.f32 %v658, %v658
      %v691 = vmul.f32 %v659, %v659
      %v692 = vmul.f32 %v660, %v660
      %v693 = vmul.f32 %v661, %v661
      %v694 = vmul.f32 %v662, %v662
      %v695 = vmul.f32 %v663, %v663
      %v696 = vmul.f32 %v664, %v664
      %v697 = vmul.f32 %v665, %v665
      %v698 = vmul.f32 %v666, %v666
      %v699 = vmul.f32 %v667, %v667
      %v700 = vadd.f32 %v668, %v669
      %v701 = vadd.f32 %v700, %v670
      %v702 = vadd.f32 %v701, %v671
      %v703 = vadd.f32 %v702, %v672
      %v704 = vadd.f32 %v703, %v673
      %v705 = vadd.f32 %v704, %v674
      %v706 = vadd.f32 %v705, %v675
      %v707 = vadd.f32 %v706, %v676
      %v708 = vadd.f32 %v707, %v677
      %v709 = vadd.f32 %v708, %v678
      %v710 = vadd.f32 %v709, %v679
      %v711 = vadd.f32 %v710, %v680
      %v712 = vadd.f32 %v711, %v681
      %v713 = vadd.f32 %v712, %v682
      %v714 = vadd.f32 %v713, %v683
      %v715 = vadd.f32 %v714, %v684
      %v716 = vadd.f32 %v715, %v685
      %v717 = vadd.f32 %v716, %v686
      %v718 = vadd.f32 %v717, %v687
      %v719 = vadd.f32 %v718, %v688
      %v720 = vadd.f32 %v719, %v689
      %v721 = vadd.f32 %v720, %v690
      %v722 = vadd.f32 %v721, %v691
      %v723 = vadd.f32 %v722, %v692
      %v724 = vadd.f32 %v723, %v693
      %v725 = vadd.f32 %v724, %v694
      %v726 = vadd.f32 %v725, %v695
      %v727 = vadd.f32 %v726, %v696
      %v728 = vadd.f32 %v727, %v697
      %v729 = vadd.f32 %v728, %v698
      %v730 = vadd.f32 %v729, %v699
      %v731 = vrot.slane %v730, 4
      %v732 = vadd.f32 %v730, %v731
      %v733 = vrot.slane %v732, 2
      %v734 = vadd.f32 %v732, %v733
      %v735 = vrot.slane %v734, 1
      %v736 = vadd.f32 %v734, %v735
      %s737 = smul.u32 %s16, 256
      %s738 = scvt.s32.f32 %s737
      %s739 = sadd.f32 %s738, 256.0
      %v740 = vld [vmem:[%s3] sm:$0x1]
      %v741 = vsub.f32 %v635, %v740
      %v742 = vstv %s739
      %v743 = vrcp.pop %v742
      %s744 = vtos %v743
      %s745 = smul.f32 256.0, %s744
      %v746 = vstv %s745
      %v747 = vmul.f32 %v741, %v746
      %v748 = vadd.f32 %v740, %v747
      %749 = vst [vmem:[%s3] sm:$0x1] %v748
      %v750 = vld [vmem:[%s4] sm:$0x1]
      %v751 = vadd.f32 %v750, %v736
      %v752 = vmul.f32 %v741, %v741
      %s753 = smul.f32 %s738, %s745
      %v754 = vstv %s753
      %v755 = vmul.f32 %v752, %v754
      %v756 = vadd.f32 %v751, %v755
      %757 = vst [vmem:[%s4] sm:$0x1] %v756
      %p758 = scmp.eq.s32.totalorder %s16, 1
      // Predicated region
      $region33: #{double_conv.6} parent=27 // pred_check
        %p759 = pneg %p758
      $region34: #{double_conv.6} parent=27 // pred_check_branch
        %761 = sbr.rel (%p759) target = $region36
      $region35: #{double_conv.6} parent=27 // pred_region
        %v762 = vld [vmem:[%s4] sm:$0x1]
        %v763 = vstv %s739
        %v764 = vrcp.pop %v763
        %v765 = vmul.f32 %v762, %v764
        %766 = vst [vmem:[%s4] sm:$0x1] %v765
      $region36: #{double_conv.6} parent=27 // pred_fallthru
        _
      %s767 = smul.u32 32, %s16
      %p768 = scmp.lt.s32.totalorder %s767, 63
      %s769 = scalar_select %p768, %s767, 63
      %s770 = smul.addr %s769, 8
      %s771 = scalar_lea.vmem %s2, %s770
      // Predicated region
      $region37: #{double_conv.6} parent=27 // pred_check
        %p772 = pneg %p81
      $region38: #{double_conv.6} parent=27 // pred_check_branch
        %774 = sbr.rel (%p772) target = $region40
      $region39: #{double_conv.6} parent=27 // pred_region
        %s775 = smul.u32 32, %s16
      $region40: #{double_conv.6} parent=27 // pred_fallthru
        _
      // Predicated region
      $region41: #{double_conv.6} parent=27 // pred_check
        %p776 = pneg %p102
      $region42: #{double_conv.6} parent=27 // pred_check_branch
        %778 = sbr.rel (%p776) target = $region44
      $region43: #{double_conv.6} parent=27 // pred_region
        _
      $region44: #{double_conv.6} parent=27 // pred_fallthru
        _
      // Predicated region
      $region45: #{double_conv.6} parent=27 // pred_check
        %p779 = pneg %p123
      $region46: #{double_conv.6} parent=27 // pred_check_branch
        %781 = sbr.rel (%p779) target = $region48
      $region47: #{double_conv.6} parent=27 // pred_region
        _
      $region48: #{double_conv.6} parent=27 // pred_fallthru
        _
      // Predicated region
      $region49: #{double_conv.6} parent=27 // pred_check
        %p782 = pneg %p102
      $region50: #{double_conv.6} parent=27 // pred_check_branch
        %784 = sbr.rel (%p782) target = $region52
      $region51: #{double_conv.6} parent=27 // pred_region
        _
      $region52: #{double_conv.6} parent=27 // pred_fallthru
        _
      // Predicated region
      $region53: #{double_conv.6} parent=27 // pred_check
        %p785 = pneg %p123
      $region54: #{double_conv.6} parent=27 // pred_check_branch
        %787 = sbr.rel (%p785) target = $region56
      $region55: #{double_conv.6} parent=27 // pred_region
        _
      $region56: #{double_conv.6} parent=27 // pred_fallthru
        _
    $region28: #{double_conv.6} parent=5 // pred_fallthru
      _
    %p788 = scmp.le.s32.totalorder 2, %s11
    // Predicated region
    $region57: #{double_conv.6} parent=5 // pred_check
      %p789 = pneg %p788
    $region58: #{double_conv.6} parent=5 // pred_check_branch
      %791 = sbr.rel (%p789) target = $region60
    $region59: #{double_conv.6} parent=5 // pred_region
      %s792 = ssub.s32 %s11, 2
      // Predicated region
      $region61: #{double_conv.6} parent=59 // pred_check
        %p793 = pneg %p87
      $region62: #{double_conv.6} parent=59 // pred_check_branch
        %795 = sbr.rel (%p793) target = $region64
      $region63: #{double_conv.6} parent=59 // pred_region
        %s796 = smul.u32 32, %s17
        %p797 = scmp.lt.s32.totalorder %s796, 63
        %s798 = scalar_select %p797, %s796, 63
        %s799 = smul.addr %s798, 8
        %s800 = scalar_lea.vmem %s2, %s799
      $region64: #{double_conv.6} parent=59 // pred_fallthru
        _
    $region60: #{double_conv.6} parent=5 // pred_fallthru
      _
  $region6: #{double_conv.6} parent=0 // loop_footer
    %s15 = sadd.s32 1, %s11
  $region7: #{double_conv.6} parent=0 // loop_footer_branch
    %10 = sbr.rel target = $region3
  $region8: #{double_conv.6} parent=0 // loop_exit
    _

</llo_original>
